<compile_context>
chip_gen: v5e
topology: v5e:2x2
jax: 0.10.0
libtpu: 0.0.40
codegen_flags: <defaults>
</compile_context>

<pallas_src>
import functools
import random as pyrandom

import numpy as np
import jax
import jax.numpy as jnp
from jax.experimental import pallas as pl
from jax.experimental.pallas import tpu as pltpu


# ----------------------------------------------------------------------------
# Pallas kernel: band-limited accumulated matmuls + elementwise combine.
# Grid = (j, s): j indexes output time tiles, s steps through the k-blocks that
# overlap the delay band (k = ktab[j, s], gated by cnt[j]).
# ----------------------------------------------------------------------------
def _revecho_kernel(cnt_ref, ktab_ref,
                    noise_k, clean_k, mn_kj, mc_kj, noise_j, clean_j,
                    noise_out, clean_out, rc_acc, *, keep_clean):
    j = pl.program_id(0)
    s = pl.program_id(1)

    @pl.when(s == 0)
    def _init():
        # Direct noise term goes straight into the resident output tile
        # (saves one VMEM accumulator); clean-reverb accumulator is reset.
        noise_out[...] = noise_j[...]
        rc_acc[...] = jnp.zeros_like(rc_acc)

    # Only real band blocks contribute; padded steps (s >= cnt[j]) repeat the
    # previous block index in ktab so no extra DMA happens, and the dot is skipped.
    @pl.when(s < cnt_ref[j])
    def _accumulate():
        # Native bf16 x bf16 MXU path with f32 accumulation: downcast the tiny
        # (R, tk) source tile rather than materializing an f32 copy of the
        # (tk, tj) M tile.  Only the echo (reverb) terms see bf16 rounding.
        n_bf = noise_k[...].astype(jnp.bfloat16)
        c_bf = clean_k[...].astype(jnp.bfloat16)
        noise_out[...] += jnp.dot(n_bf, mn_kj[...],
                                  preferred_element_type=jnp.float32)
        rc_acc[...] += jnp.dot(c_bf, mc_kj[...],
                               preferred_element_type=jnp.float32)

    @pl.when(s == pl.num_programs(1) - 1)
    def _finalize():
        rc = rc_acc[...]
        noise_out[...] = noise_out[...] + (1.0 - keep_clean) * rc
        clean_out[...] = (clean_j[...] + keep_clean * rc).astype(clean_out.dtype)


def revecho_pallas(noise, clean, m_noise, m_clean, cnt, ktab, keep_clean,
                   *, tj=512, tk=512):
    """noise/clean: [R, T] f32; m_*: [T, T] bf16; cnt: [nj] i32; ktab: [nj, nk] i32."""
    R, T = noise.shape
    assert noise.dtype == jnp.float32 and clean.dtype == jnp.float32
    assert T % tj == 0 and T % tk == 0
    nj = T // tj
    s_max = int(ktab.shape[1])        # static (= nk): no per-call recompiles

    # keep_clean is a module constant (set once in __init__), so baking it as a
    # Python float does not cause per-call recompiles.
    kernel = functools.partial(_revecho_kernel, keep_clean=float(keep_clean))

    grid_spec = pltpu.PrefetchScalarGridSpec(
        num_scalar_prefetch=2,              # cnt, ktab -> SMEM, usable in index_maps
        grid=(nj, s_max),
        in_specs=[
            # band (reduction) source tiles, gathered via the k-table
            pl.BlockSpec((R, tk), lambda j, s, cnt, ktab: (0, ktab[j, s])),
            pl.BlockSpec((R, tk), lambda j, s, cnt, ktab: (0, ktab[j, s])),
            # banded bf16 shift/gain matrices: only blocks inside the band are fetched
            pl.BlockSpec((tk, tj), lambda j, s, cnt, ktab: (ktab[j, s], j)),
            pl.BlockSpec((tk, tj), lambda j, s, cnt, ktab: (ktab[j, s], j)),
            # output-aligned (direct-term) source tiles (fetched once per j)
            pl.BlockSpec((R, tj), lambda j, s, cnt, ktab: (0, j)),
            pl.BlockSpec((R, tj), lambda j, s, cnt, ktab: (0, j)),
        ],
        out_specs=[
            pl.BlockSpec((R, tj), lambda j, s, cnt, ktab: (0, j)),
            pl.BlockSpec((R, tj), lambda j, s, cnt, ktab: (0, j)),
        ],
        scratch_shapes=[pltpu.VMEM((R, tj), jnp.float32)],
    )

    return pl.pallas_call(
        kernel,
        grid_spec=grid_spec,
        out_shape=(jax.ShapeDtypeStruct((R, T), noise.dtype),
                   jax.ShapeDtypeStruct((R, T), clean.dtype)),
        compiler_params=pltpu.CompilerParams(
            dimension_semantics=("parallel", "arbitrary")),
    )(cnt, ktab, noise, clean, m_noise, m_clean, noise, clean)


# ----------------------------------------------------------------------------
# Host-side glue: replicate RevEcho's Python-level sampling, fold the echo train
# into banded bf16 shift/gain matrices (built in numpy), and build the per-output
# band tables for the scalar-prefetched index maps.
# ----------------------------------------------------------------------------
class RevEcho:
    def __init__(self, proba=1.0, initial=0.3, rt60=(0.3, 1.3),
                 first_delay=(0.01, 0.03), repeat=3, jitter=0.1,
                 keep_clean=0.1, sample_rate=4000, seed=0):
        self.proba = proba
        self.initial = initial
        self.rt60 = rt60
        self.first_delay = first_delay
        self.repeat = repeat
        self.jitter = jitter
        self.keep_clean = keep_clean
        self.sample_rate = sample_rate
        self._rng = pyrandom.Random(seed)

    def _echo_schedule(self, length, initial, first_delay, rt60):
        """Mirror of _reverb's inner loops: list of (cumulative_delay, gain)."""
        sched = []
        for _ in range(self.repeat):
            frac = 1.0
            gain = initial
            cum_delay = 0
            while frac > 0.001:
                jit = 1 + self.jitter * self._rng.uniform(-1, 1)
                delay = min(1 + int(jit * first_delay * self.sample_rate), length)
                cum_delay += delay
                sched.append((cum_delay, gain))
                jit = 1 + self.jitter * self._rng.uniform(-1, 1)
                attenuation = 10 ** (-3 * jit * first_delay / rt60)
                gain *= attenuation
                frac *= attenuation
        return sched

    @staticmethod
    def _shift_matrix_np(schedule, length):
        """M[t_in, t_out] so that (source @ M)[:, t] = sum_e g_e * source[:, t - d_e].
        Built entirely in numpy via diagonal scatters (no device ops)."""
        m = np.zeros((length, length), np.float32)
        per_delay = {}
        for d, g in schedule:
            if 0 < d < length:
                per_delay[d] = per_delay.get(d, 0.0) + g
        for d, g in per_delay.items():
            idx = np.arange(length - d)
            m[idx, idx + d] += np.float32(g)
        return m

    @staticmethod
    def _band_tables(delays, length, tj, tk):
        """For each output tile j, the contiguous range of k-blocks overlapping the
        delay band [d_min, d_max].  ktab has a *static* width nk (padded entries
        repeat the last valid k so they trigger no extra DMA); the real count per
        tile lives in cnt, so shapes never change across calls -> no recompiles."""
        nj, nk = length // tj, length // tk
        if len(delays) == 0:
            d_min, d_max = 1, 1      # no in-range echo: M is all zero anyway
        else:
            d_min, d_max = int(min(delays)), int(max(delays))
        js = np.arange(nj)
        k_lo = np.maximum(0, (js * tj - d_max) // tk)
        k_hi = np.minimum(nk - 1, ((js + 1) * tj - 1 - d_min) // tk)
        # clamp: if no block contributes, the whole M column block is zero, so a
        # single gated dot with block k_lo is still correct.
        cnt = np.maximum(1, k_hi - k_lo + 1).astype(np.int32)
        k_lo = np.clip(k_lo, 0, nk - 1).astype(np.int32)
        ktab = np.empty((nj, nk), np.int32)
        for j in range(nj):
            for s in range(nk):
                ktab[j, s] = k_lo[j] + min(s, int(cnt[j]) - 1)
        return cnt, ktab

    def __call__(self, wav):
        # wav: [3, B, C, T] float32
        if self._rng.random() >= self.proba:
            # TODO(synk): the `random() >= proba` gate and all jitter sampling are
            # host-side Python randomness (as in the original torch module); they
            # cannot live inside the kernel / under jit and the ungated branch
            # returns the input unchanged like the torch forward.
            return wav, None
        S, B, C, T = wav.shape
        assert S == 3
        initial = self._rng.random() * self.initial
        first_delay = self._rng.uniform(*self.first_delay)
        rt60 = self._rng.uniform(*self.rt60)

        # Jitter is re-drawn inside each _reverb call -> two distinct schedules,
        # in the same call order as the torch forward (noise first, then clean).
        sched_noise = self._echo_schedule(T, initial, first_delay, rt60)
        sched_clean = self._echo_schedule(T, initial, first_delay, rt60)

        tile = min(512, T)
        assert T % tile == 0

        # bf16 matrices halve the dominant HBM stream; gains carry ~0.4% rel. error.
        m_noise = jnp.asarray(self._shift_matrix_np(sched_noise, T), dtype=jnp.bfloat16)
        m_clean = jnp.asarray(self._shift_matrix_np(sched_clean, T), dtype=jnp.bfloat16)

        delays = [d for d, _ in (sched_noise + sched_clean) if 0 < d < T]
        cnt, ktab = self._band_tables(delays, T, tile, tile)

        noise = wav[0].reshape(B * C, T)
        clean = wav[1].reshape(B * C, T)
        interf = wav[2]

        noise_out, clean_out = revecho_pallas(
            noise, clean, m_noise, m_clean,
            jnp.asarray(cnt), jnp.asarray(ktab), self.keep_clean,
            tj=tile, tk=tile)
        out = jnp.stack([noise_out.reshape(B, C, T),
                         clean_out.reshape(B, C, T),
                         interf])
        return out, (sched_noise, sched_clean)


# ----------------------------------------------------------------------------
# Pure-numpy reference (direct shift-and-accumulate, matches the torch loops).
# ----------------------------------------------------------------------------
def _reverb_ref(x, schedule):
    T = x.shape[-1]
    rvb = np.zeros_like(x)
    for d, g in schedule:
        if d < T:
            rvb[..., d:] += g * x[..., :T - d]
    return rvb


if __name__ == "__main__":
    B, C, T = 2, 4, 1024
    key = jax.random.PRNGKey(0)
    wav = jax.random.normal(key, (3, B, C, T), dtype=jnp.float32)

    aug = RevEcho(proba=1.0, sample_rate=4000, seed=0)
    out, scheds = aug(wav)
    out = jax.block_until_ready(out)

    # Reference check (full-precision gains; kernel uses bf16 M / bf16 source in
    # the reverb matmuls with f32 accumulation, so tolerance is bounded by the
    # ~0.4% bf16 quantization on the echo terms; the direct term is exact).
    sched_noise, sched_clean = scheds
    wav_np = np.asarray(wav, dtype=np.float32)
    noise_np, clean_np, interf_np = wav_np[0], wav_np[1], wav_np[2]
    rvb_n = _reverb_ref(noise_np, sched_noise)
    rvb_c = _reverb_ref(clean_np, sched_clean)
    kc = aug.keep_clean
    ref = np.stack([noise_np + rvb_n + (1.0 - kc) * rvb_c,
                    clean_np + kc * rvb_c,
                    interf_np])
    np.testing.assert_allclose(np.asarray(out), ref, rtol=2e-2, atol=5e-2)

    print("KERNEL_OK")
</pallas_src>

<mosaic_0001>
module attributes {stable_mosaic.version = 11 : i64} {
  func.func @_revecho_kernel(%arg0: i32, %arg1: i32, %arg2: memref<2xi32, #tpu.memory_space<smem>>, %arg3: memref<2x2xi32, #tpu.memory_space<smem>>, %arg4: memref<8x512xf32, #tpu.memory_space<vmem>>, %arg5: memref<8x512xf32, #tpu.memory_space<vmem>>, %arg6: memref<512x512xbf16, #tpu.memory_space<vmem>>, %arg7: memref<512x512xbf16, #tpu.memory_space<vmem>>, %arg8: memref<8x512xf32, #tpu.memory_space<vmem>>, %arg9: memref<8x512xf32, #tpu.memory_space<vmem>>, %arg10: memref<8x512xf32, #tpu.memory_space<vmem>>, %arg11: memref<8x512xf32, #tpu.memory_space<vmem>>, %arg12: memref<8x512xf32, #tpu.memory_space<vmem>>) attributes {dimension_semantics = [#tpu.dimension_semantics<parallel>, #tpu.dimension_semantics<arbitrary>], iteration_bounds = array<i64: 2, 2>, scalar_prefetch = 2 : i64, scratch_operands = 1 : i64, tpu.core_type = #tpu.core_type<tc>, window_params = [{transform_indices = @transform_0, window_bounds = array<i64: 8, 512>}, {transform_indices = @transform_1, window_bounds = array<i64: 8, 512>}, {transform_indices = @transform_2, window_bounds = array<i64: 512, 512>}, {transform_indices = @transform_3, window_bounds = array<i64: 512, 512>}, {transform_indices = @transform_4, window_bounds = array<i64: 8, 512>}, {transform_indices = @transform_5, window_bounds = array<i64: 8, 512>}, {transform_indices = @transform_6, window_bounds = array<i64: 8, 512>}, {transform_indices = @transform_7, window_bounds = array<i64: 8, 512>}]} {
    %c0_i32 = arith.constant 0 : i32
    %0 = arith.cmpi eq, %arg1, %c0_i32 : i32
    %1 = arith.extui %0 : i1 to i32
    %c0_i32_0 = arith.constant 0 : i32
    %2 = arith.cmpi ne, %1, %c0_i32_0 : i32
    scf.if %2 {
      %c0 = arith.constant 0 : index
      %c0_3 = arith.constant 0 : index
      %11 = vector.load %arg8[%c0, %c0_3] : memref<8x512xf32, #tpu.memory_space<vmem>>, vector<8x512xf32>
      %c0_4 = arith.constant 0 : index
      %c0_5 = arith.constant 0 : index
      %12 = vector.load %arg10[%c0_4, %c0_5] : memref<8x512xf32, #tpu.memory_space<vmem>>, vector<8x512xf32>
      tpu.vector_store %arg10[%c0_4, %c0_5], %11 {strides = array<i32>} : memref<8x512xf32, #tpu.memory_space<vmem>>, vector<8x512xf32>,
      %cst = arith.constant 0.000000e+00 : f32
      %13 = vector.broadcast %cst : f32 to vector<8x512xf32>
      %c0_6 = arith.constant 0 : index
      %c0_7 = arith.constant 0 : index
      %14 = vector.load %arg12[%c0_6, %c0_7] : memref<8x512xf32, #tpu.memory_space<vmem>>, vector<8x512xf32>
      tpu.vector_store %arg12[%c0_6, %c0_7], %13 {strides = array<i32>} : memref<8x512xf32, #tpu.memory_space<vmem>>, vector<8x512xf32>,
    } else {
    }
    %3 = arith.index_cast %arg0 : i32 to index
    %4 = memref.load %arg2[%3] : memref<2xi32, #tpu.memory_space<smem>>
    %5 = arith.cmpi slt, %arg1, %4 : i32
    %6 = arith.extui %5 : i1 to i32
    %c0_i32_1 = arith.constant 0 : i32
    %7 = arith.cmpi ne, %6, %c0_i32_1 : i32
    scf.if %7 {
      %c0 = arith.constant 0 : index
      %c0_3 = arith.constant 0 : index
      %11 = vector.load %arg4[%c0, %c0_3] : memref<8x512xf32, #tpu.memory_space<vmem>>, vector<8x512xf32>
      %12 = arith.truncf %11 : vector<8x512xf32> to vector<8x512xbf16>
      %c0_4 = arith.constant 0 : index
      %c0_5 = arith.constant 0 : index
      %13 = vector.load %arg5[%c0_4, %c0_5] : memref<8x512xf32, #tpu.memory_space<vmem>>, vector<8x512xf32>
      %14 = arith.truncf %13 : vector<8x512xf32> to vector<8x512xbf16>
      %c0_6 = arith.constant 0 : index
      %c0_7 = arith.constant 0 : index
      %15 = vector.load %arg10[%c0_6, %c0_7] : memref<8x512xf32, #tpu.memory_space<vmem>>, vector<8x512xf32>
      %c0_8 = arith.constant 0 : index
      %c0_9 = arith.constant 0 : index
      %16 = vector.load %arg6[%c0_8, %c0_9] : memref<512x512xbf16, #tpu.memory_space<vmem>>, vector<512x512xbf16>
      %cst = arith.constant dense<0.000000e+00> : vector<8x512xf32>
      %17 = tpu.matmul %12, %16, %cst {dimension_numbers = #tpu.dot_dimension_numbers<[1], [0], [0], [1], [0, 0, 1, 1], [], []>} : vector<8x512xbf16>, vector<512x512xbf16>, vector<8x512xf32> -> vector<8x512xf32>
      %18 = arith.addf %15, %17 : vector<8x512xf32>
      %c0_10 = arith.constant 0 : index
      %c0_11 = arith.constant 0 : index
      %19 = vector.load %arg10[%c0_10, %c0_11] : memref<8x512xf32, #tpu.memory_space<vmem>>, vector<8x512xf32>
      tpu.vector_store %arg10[%c0_10, %c0_11], %18 {strides = array<i32>} : memref<8x512xf32, #tpu.memory_space<vmem>>, vector<8x512xf32>,
      %c0_12 = arith.constant 0 : index
      %c0_13 = arith.constant 0 : index
      %20 = vector.load %arg12[%c0_12, %c0_13] : memref<8x512xf32, #tpu.memory_space<vmem>>, vector<8x512xf32>
      %c0_14 = arith.constant 0 : index
      %c0_15 = arith.constant 0 : index
      %21 = vector.load %arg7[%c0_14, %c0_15] : memref<512x512xbf16, #tpu.memory_space<vmem>>, vector<512x512xbf16>
      %cst_16 = arith.constant dense<0.000000e+00> : vector<8x512xf32>
      %22 = tpu.matmul %14, %21, %cst_16 {dimension_numbers = #tpu.dot_dimension_numbers<[1], [0], [0], [1], [0, 0, 1, 1], [], []>} : vector<8x512xbf16>, vector<512x512xbf16>, vector<8x512xf32> -> vector<8x512xf32>
      %23 = arith.addf %20, %22 : vector<8x512xf32>
      %c0_17 = arith.constant 0 : index
      %c0_18 = arith.constant 0 : index
      %24 = vector.load %arg12[%c0_17, %c0_18] : memref<8x512xf32, #tpu.memory_space<vmem>>, vector<8x512xf32>
      tpu.vector_store %arg12[%c0_17, %c0_18], %23 {strides = array<i32>} : memref<8x512xf32, #tpu.memory_space<vmem>>, vector<8x512xf32>,
    } else {
    }
    %c1_i32 = arith.constant 1 : i32
    %8 = arith.cmpi eq, %arg1, %c1_i32 : i32
    %9 = arith.extui %8 : i1 to i32
    %c0_i32_2 = arith.constant 0 : i32
    %10 = arith.cmpi ne, %9, %c0_i32_2 : i32
    scf.if %10 {
      %c0 = arith.constant 0 : index
      %c0_3 = arith.constant 0 : index
      %11 = vector.load %arg12[%c0, %c0_3] : memref<8x512xf32, #tpu.memory_space<vmem>>, vector<8x512xf32>
      %c0_4 = arith.constant 0 : index
      %c0_5 = arith.constant 0 : index
      %12 = vector.load %arg10[%c0_4, %c0_5] : memref<8x512xf32, #tpu.memory_space<vmem>>, vector<8x512xf32>
      %cst = arith.constant 0.899999976 : f32
      %13 = vector.broadcast %cst : f32 to vector<8x512xf32>
      %14 = arith.mulf %13, %11 : vector<8x512xf32>
      %15 = arith.addf %12, %14 : vector<8x512xf32>
      %c0_6 = arith.constant 0 : index
      %c0_7 = arith.constant 0 : index
      %16 = vector.load %arg10[%c0_6, %c0_7] : memref<8x512xf32, #tpu.memory_space<vmem>>, vector<8x512xf32>
      tpu.vector_store %arg10[%c0_6, %c0_7], %15 {strides = array<i32>} : memref<8x512xf32, #tpu.memory_space<vmem>>, vector<8x512xf32>,
      %c0_8 = arith.constant 0 : index
      %c0_9 = arith.constant 0 : index
      %17 = vector.load %arg9[%c0_8, %c0_9] : memref<8x512xf32, #tpu.memory_space<vmem>>, vector<8x512xf32>
      %cst_10 = arith.constant 1.000000e-01 : f32
      %18 = vector.broadcast %cst_10 : f32 to vector<8x512xf32>
      %19 = arith.mulf %18, %11 : vector<8x512xf32>
      %20 = arith.addf %17, %19 : vector<8x512xf32>
      %c0_11 = arith.constant 0 : index
      %c0_12 = arith.constant 0 : index
      %21 = vector.load %arg11[%c0_11, %c0_12] : memref<8x512xf32, #tpu.memory_space<vmem>>, vector<8x512xf32>
      tpu.vector_store %arg11[%c0_11, %c0_12], %20 {strides = array<i32>} : memref<8x512xf32, #tpu.memory_space<vmem>>, vector<8x512xf32>,
    } else {
    }
    return
  }
  func.func @transform_0(%arg0: i32, %arg1: i32, %arg2: memref<2xi32, #tpu.memory_space<smem>>, %arg3: memref<2x2xi32, #tpu.memory_space<smem>>) -> (i32, i32) {
    %0 = arith.index_cast %arg0 : i32 to index
    %1 = arith.index_cast %arg1 : i32 to index
    %2 = memref.load %arg3[%0, %1] : memref<2x2xi32, #tpu.memory_space<smem>>
    %c0_i32 = arith.constant 0 : i32
    %c0_i32_0 = arith.constant 0 : i32
    return %c0_i32, %2 : i32, i32
  }
  func.func @transform_1(%arg0: i32, %arg1: i32, %arg2: memref<2xi32, #tpu.memory_space<smem>>, %arg3: memref<2x2xi32, #tpu.memory_space<smem>>) -> (i32, i32) {
    %0 = arith.index_cast %arg0 : i32 to index
    %1 = arith.index_cast %arg1 : i32 to index
    %2 = memref.load %arg3[%0, %1] : memref<2x2xi32, #tpu.memory_space<smem>>
    %c0_i32 = arith.constant 0 : i32
    %c0_i32_0 = arith.constant 0 : i32
    return %c0_i32, %2 : i32, i32
  }
  func.func @transform_2(%arg0: i32, %arg1: i32, %arg2: memref<2xi32, #tpu.memory_space<smem>>, %arg3: memref<2x2xi32, #tpu.memory_space<smem>>) -> (i32, i32) {
    %0 = arith.index_cast %arg0 : i32 to index
    %1 = arith.index_cast %arg1 : i32 to index
    %2 = memref.load %arg3[%0, %1] : memref<2x2xi32, #tpu.memory_space<smem>>
    %c0_i32 = arith.constant 0 : i32
    return %2, %arg0 : i32, i32
  }
  func.func @transform_3(%arg0: i32, %arg1: i32, %arg2: memref<2xi32, #tpu.memory_space<smem>>, %arg3: memref<2x2xi32, #tpu.memory_space<smem>>) -> (i32, i32) {
    %0 = arith.index_cast %arg0 : i32 to index
    %1 = arith.index_cast %arg1 : i32 to index
    %2 = memref.load %arg3[%0, %1] : memref<2x2xi32, #tpu.memory_space<smem>>
    %c0_i32 = arith.constant 0 : i32
    return %2, %arg0 : i32, i32
  }
  func.func @transform_4(%arg0: i32, %arg1: i32, %arg2: memref<2xi32, #tpu.memory_space<smem>>, %arg3: memref<2x2xi32, #tpu.memory_space<smem>>) -> (i32, i32) {
    %c0_i32 = arith.constant 0 : i32
    %c0_i32_0 = arith.constant 0 : i32
    return %c0_i32, %arg0 : i32, i32
  }
  func.func @transform_5(%arg0: i32, %arg1: i32, %arg2: memref<2xi32, #tpu.memory_space<smem>>, %arg3: memref<2x2xi32, #tpu.memory_space<smem>>) -> (i32, i32) {
    %c0_i32 = arith.constant 0 : i32
    %c0_i32_0 = arith.constant 0 : i32
    return %c0_i32, %arg0 : i32, i32
  }
  func.func @transform_6(%arg0: i32, %arg1: i32, %arg2: memref<2xi32, #tpu.memory_space<smem>>, %arg3: memref<2x2xi32, #tpu.memory_space<smem>>) -> (i32, i32) {
    %c0_i32 = arith.constant 0 : i32
    %c0_i32_0 = arith.constant 0 : i32
    return %c0_i32, %arg0 : i32, i32
  }
  func.func @transform_7(%arg0: i32, %arg1: i32, %arg2: memref<2xi32, #tpu.memory_space<smem>>, %arg3: memref<2x2xi32, #tpu.memory_space<smem>>) -> (i32, i32) {
    %c0_i32 = arith.constant 0 : i32
    %c0_i32_0 = arith.constant 0 : i32
    return %c0_i32, %arg0 : i32, i32
  }
}

</mosaic_0001>

<llo_original>
// kernel: tpu_custom_call.1
$region0: #{tpu_custom_call.1}
  #allocation0 [shape = 'u32[]', space=smem, size = 0x4, offset = 0x4, fixed_abs, tag = 'smem constant byte address 0x4 - core index']
  #allocation1 [shape = 'u32[72,128]{1,0:T(1,128)}', space=vmem, size = 0x9000, scoped, tag = 'internal scratch']
  #allocation2 [shape = 'f32[8,512]{1,0:T(8,128)}', space=vmem, size = 0x4000, scoped, tag = 'scratch operand']
  #allocation3 [shape = 's32[1]{0}', space=sflag, size = 0x4, scoped, tag = 'scoped memory for tpu_custom_call.1']
  #allocation4 [shape = 'u8[512]{0}', space=smem, size = 0x200, scoped, tag = 'prefetched SMEM operand 0']
  #allocation5 [shape = 'u8[1024]{0}', space=smem, size = 0x400, scoped, tag = 'prefetched SMEM operand 1']
  %s0 = inlined_call_operand.hbm [shape: s32[2], index: 0, kind: input, shape index: {}]
  %s1 = inlined_call_operand.hbm [shape: s32[2,2], index: 1, kind: input, shape index: {}]
  %s2 = inlined_call_operand.hbm [shape: f32[8,1024], index: 2, kind: input, shape index: {}]
  %s3 = inlined_call_operand.hbm [shape: f32[8,1024], index: 3, kind: input, shape index: {}]
  %s4 = inlined_call_operand.hbm [shape: bf16[1024,1024], index: 4, kind: input, shape index: {}]
  %s5 = inlined_call_operand.hbm [shape: bf16[1024,1024], index: 5, kind: input, shape index: {}]
  %s6 = inlined_call_operand.hbm [shape: f32[8,1024], index: 6, kind: input, shape index: {}]
  %s7 = inlined_call_operand.hbm [shape: f32[8,1024], index: 7, kind: input, shape index: {}]
  %s8 = inlined_call_operand.hbm [shape: f32[8,1024], index: 8, kind: output, shape index: {0}]
  %s9 = inlined_call_operand.hbm [shape: f32[8,1024], index: 9, kind: output, shape index: {1}]
  %10 = xla_tuple %s8, %s9
  %s11 = sld [smem:[#allocation0]]
  $region101: #{tpu_custom_call.1} parent=0
    _
  %s13 = ssub.s32 1, %s11
  %s14 = scalar_select 0, %s13, %s11
  %s16 = sshll.u32 %s0, 4
  %s17 = int_to_ptr.hbm [resolvable:$true] %s16
  %19 = dma.hbm_to_smem %s17, 16, [#allocation4], [#allocation3]
  %s21 = sshll.u32 %s1, 4
  %s22 = int_to_ptr.hbm [resolvable:$true] %s21
  %24 = dma.hbm_to_smem %s22, 32, [#allocation5], [#allocation3]
  %26 = dma.done [#allocation3], 48
  %27 = sfence
  $region1: #{tpu_custom_call.1} parent=0
    #allocation6 [shape = 'u8[32768]{0}', space=vmem, size = 0x8000, scoped, tag = 'input window, operand 2']
    #allocation7 [shape = 's32[2]{0}', space=sflag, size = 0x8, scoped, tag = 'scoped memory for tpu_custom_call.1']
    #allocation8 [shape = 's32[2]{0}', space=sflag, size = 0x8, scoped, tag = 'scoped memory for tpu_custom_call.1']
    #allocation9 [shape = 'u8[32768]{0}', space=vmem, size = 0x8000, scoped, tag = 'input window, operand 3']
    #allocation10 [shape = 's32[2]{0}', space=sflag, size = 0x8, scoped, tag = 'scoped memory for tpu_custom_call.1']
    #allocation11 [shape = 'u8[1048576]{0}', space=vmem, size = 0x100000, scoped, tag = 'input window, operand 4']
    #allocation12 [shape = 'u8[1048576]{0}', space=vmem, size = 0x100000, scoped, tag = 'input window, operand 5']
    #allocation13 [shape = 's32[2]{0}', space=sflag, size = 0x8, scoped, tag = 'scoped memory for tpu_custom_call.1']
    #allocation14 [shape = 'u8[32768]{0}', space=vmem, size = 0x8000, scoped, tag = 'input window, operand 6']
    #allocation15 [shape = 'u8[32768]{0}', space=vmem, size = 0x8000, scoped, tag = 'input window, operand 7']
    #allocation16 [shape = 's32[2]{0}', space=sflag, size = 0x8, scoped, tag = 'scoped memory for tpu_custom_call.1']
    #allocation17 [shape = 'u8[32768]{0}', space=vmem, size = 0x8000, scoped, tag = 'output window, operand 0']
    #allocation18 [shape = 'u8[32768]{0}', space=vmem, size = 0x8000, scoped, tag = 'output window, operand 1']
    #allocation19 [shape = 's32[2]{0}', space=sflag, size = 0x8, scoped, tag = 'scoped memory for tpu_custom_call.1']
    %28 = vsyncpa [#allocation7], 0
    %s29 = scalar_lea.sflag [#allocation7], 1
    %30 = vsyncpa %s29, 0
    %31 = vsyncpa [#allocation10], 0
    %s32 = scalar_lea.sflag [#allocation10], 1
    %33 = vsyncpa %s32, 0
    %34 = vsyncpa [#allocation13], 0
    %s35 = scalar_lea.sflag [#allocation13], 1
    %36 = vsyncpa %s35, 0
    %37 = vsyncpa [#allocation16], 0
    %s38 = scalar_lea.sflag [#allocation16], 1
    %39 = vsyncpa %s38, 0
    %40 = vsyncpa [#allocation8], 0
    %s41 = scalar_lea.sflag [#allocation8], 1
    %42 = vsyncpa %s41, 0
    %43 = vsyncpa [#allocation19], 0
    %s44 = scalar_lea.sflag [#allocation19], 1
    %45 = vsyncpa %s44, 0
    loop: start=0, step=1, limit=6
    $region2: #{tpu_custom_call.1} parent=1 // loop_pre_header
      _
    $region3: #{tpu_custom_call.1} parent=1 // loop_header
      %s47 = sphi 0, %s51
      %p48 = scmp.ge.s32.totalorder %s47, 6
      %s54 = sphi 0, %s66
      %s55 = sphi 0, %s62
      %s56 = sphi 0, %s54
      %s57 = sphi 0, %s55
      %s58 = sphi 0, %s56
      %s59 = sphi 0, %s57
      %s85 = sphi 0, %s87
      %s88 = sphi 0, %s85
      %s89 = sphi 0, %s88
      %s105 = sphi 0, %s89
      %s127 = sphi 0, %s129
      %s130 = sphi 0, %s127
      %s131 = sphi 0, %s130
      %s147 = sphi 0, %s131
      %s171 = sphi 0, %s173
      %s174 = sphi 0, %s171
      %s175 = sphi 0, %s174
      %s191 = sphi 0, %s175
      %s215 = sphi 0, %s217
      %s218 = sphi 0, %s215
      %s219 = sphi 0, %s218
      %s235 = sphi 0, %s219
      %s241 = sphi 0, %s243
      %s244 = sphi 0, %s241
      %s245 = sphi 0, %s244
      %s261 = sphi 0, %s245
      %s267 = sphi 0, %s269
      %s270 = sphi 0, %s267
      %s271 = sphi 0, %s270
      %s287 = sphi 0, %s271
      %s293 = sphi 0, %s295
      %s296 = sphi 0, %s293
      %s297 = sphi 0, %s296
      %s313 = sphi 0, %s297
      %s319 = sphi 0, %s321
      %s322 = sphi 0, %s319
      %s323 = sphi 0, %s322
      %s339 = sphi 0, %s323
    $region4: #{tpu_custom_call.1} parent=1 // loop_header_branch
      %50 = sbr.rel (%p48) target = $region8
    $region5: #{tpu_custom_call.1} parent=1 // loop_body
      %s52 = ssub.s32 %s47, 1
      %s53 = ssub.s32 %s47, 2
      %s60 = sadd.s32 1, %s55
      %p61 = scmp.ge.s32.totalorder %s60, 2
      %s62 = scalar_select %p61, 0, %s60
      %s63 = sadd.s32 1, %s54
      %s64 = scalar_select %p61, %s63, %s54
      %p65 = scmp.ge.s32.totalorder %s64, 2
      %s66 = scalar_select %p65, 0, %s64
      %s67 = sshra.s32 %s55, 7
      %s68 = sand.u32 %s55, 127
      %s69 = sadd.s32 %s67, %s54
      %s70 = smul.u32 %s69, 128
      %s71 = sshra.s32 %s55, 7
      %s72 = sand.u32 %s55, 127
      %s73 = sadd.s32 %s70, %s72
      %s74 = sld [smem:[#allocation5 + %s73]]
      %s75 = sshra.s32 %s62, 7
      %s76 = sand.u32 %s62, 127
      %s77 = sadd.s32 %s75, %s66
      %s78 = smul.u32 %s77, 128
      %s79 = sshra.s32 %s62, 7
      %s80 = sand.u32 %s62, 127
      %s81 = sadd.s32 %s78, %s80
      %s82 = sld [smem:[#allocation5 + %s81]]
      %s83 = ssub.s32 %s74, %s82
      %p84 = scmp.eq.s32.totalorder %s83, 0
      %s86 = sadd.s32 %s85, 1
      %s87 = scalar_select %p84, %s85, %s86
      %p90 = pneg %p84
      %p91 = scmp.eq.s32.totalorder %s47, 3
      %p92 = por %p90, %p91
      %p93 = scmp.ne.s32.totalorder %s85, %s88
      %p94 = scmp.eq.s32.totalorder %s47, 0
      %p95 = por %p93, %p94
      %p96 = scmp.ne.s32.totalorder %s85, %s88
      %p97 = scmp.eq.s32.totalorder %s52, 3
      %p98 = por %p96, %p97
      %p99 = scmp.ne.s32.totalorder %s88, %s89
      %p100 = scmp.eq.s32.totalorder %s52, 0
      %p101 = por %p99, %p100
      %p102 = scmp.ne.s32.totalorder %s88, %s89
      %p103 = scmp.eq.s32.totalorder %s53, 3
      %p104 = por %p102, %p103
      %p106 = scmp.ne.s32.totalorder %s89, %s105
      %p107 = scmp.eq.s32.totalorder %s53, 0
      %p108 = por %p106, %p107
      %s109 = sshra.s32 %s55, 7
      %s110 = sand.u32 %s55, 127
      %s111 = sadd.s32 %s109, %s54
      %s112 = smul.u32 %s111, 128
      %s113 = sshra.s32 %s55, 7
      %s114 = sand.u32 %s55, 127
      %s115 = sadd.s32 %s112, %s114
      %s116 = sld [smem:[#allocation5 + %s115]]
      %s117 = sshra.s32 %s62, 7
      %s118 = sand.u32 %s62, 127
      %s119 = sadd.s32 %s117, %s66
      %s120 = smul.u32 %s119, 128
      %s121 = sshra.s32 %s62, 7
      %s122 = sand.u32 %s62, 127
      %s123 = sadd.s32 %s120, %s122
      %s124 = sld [smem:[#allocation5 + %s123]]
      %s125 = ssub.s32 %s116, %s124
      %p126 = scmp.eq.s32.totalorder %s125, 0
      %s128 = sadd.s32 %s127, 1
      %s129 = scalar_select %p126, %s127, %s128
      %p132 = pneg %p126
      %p133 = scmp.eq.s32.totalorder %s47, 3
      %p134 = por %p132, %p133
      %p135 = scmp.ne.s32.totalorder %s127, %s130
      %p136 = scmp.eq.s32.totalorder %s47, 0
      %p137 = por %p135, %p136
      %p138 = scmp.ne.s32.totalorder %s127, %s130
      %p139 = scmp.eq.s32.totalorder %s52, 3
      %p140 = por %p138, %p139
      %p141 = scmp.ne.s32.totalorder %s130, %s131
      %p142 = scmp.eq.s32.totalorder %s52, 0
      %p143 = por %p141, %p142
      %p144 = scmp.ne.s32.totalorder %s130, %s131
      %p145 = scmp.eq.s32.totalorder %s53, 3
      %p146 = por %p144, %p145
      %p148 = scmp.ne.s32.totalorder %s131, %s147
      %p149 = scmp.eq.s32.totalorder %s53, 0
      %p150 = por %p148, %p149
      %s151 = sshra.s32 %s55, 7
      %s152 = sand.u32 %s55, 127
      %s153 = sadd.s32 %s151, %s54
      %s154 = smul.u32 %s153, 128
      %s155 = sshra.s32 %s55, 7
      %s156 = sand.u32 %s55, 127
      %s157 = sadd.s32 %s154, %s156
      %s158 = sld [smem:[#allocation5 + %s157]]
      %s159 = sshra.s32 %s62, 7
      %s160 = sand.u32 %s62, 127
      %s161 = sadd.s32 %s159, %s66
      %s162 = smul.u32 %s161, 128
      %s163 = sshra.s32 %s62, 7
      %s164 = sand.u32 %s62, 127
      %s165 = sadd.s32 %s162, %s164
      %s166 = sld [smem:[#allocation5 + %s165]]
      %s167 = ssub.s32 %s158, %s166
      %s168 = ssub.s32 %s54, %s66
      %s169 = sor.u32 %s167, %s168
      %p170 = scmp.eq.s32.totalorder %s169, 0
      %s172 = sadd.s32 %s171, 1
      %s173 = scalar_select %p170, %s171, %s172
      %p176 = pneg %p170
      %p177 = scmp.eq.s32.totalorder %s47, 3
      %p178 = por %p176, %p177
      %p179 = scmp.ne.s32.totalorder %s171, %s174
      %p180 = scmp.eq.s32.totalorder %s47, 0
      %p181 = por %p179, %p180
      %p182 = scmp.ne.s32.totalorder %s171, %s174
      %p183 = scmp.eq.s32.totalorder %s52, 3
      %p184 = por %p182, %p183
      %p185 = scmp.ne.s32.totalorder %s174, %s175
      %p186 = scmp.eq.s32.totalorder %s52, 0
      %p187 = por %p185, %p186
      %p188 = scmp.ne.s32.totalorder %s174, %s175
      %p189 = scmp.eq.s32.totalorder %s53, 3
      %p190 = por %p188, %p189
      %p192 = scmp.ne.s32.totalorder %s175, %s191
      %p193 = scmp.eq.s32.totalorder %s53, 0
      %p194 = por %p192, %p193
      %s195 = sshra.s32 %s55, 7
      %s196 = sand.u32 %s55, 127
      %s197 = sadd.s32 %s195, %s54
      %s198 = smul.u32 %s197, 128
      %s199 = sshra.s32 %s55, 7
      %s200 = sand.u32 %s55, 127
      %s201 = sadd.s32 %s198, %s200
      %s202 = sld [smem:[#allocation5 + %s201]]
      %s203 = sshra.s32 %s62, 7
      %s204 = sand.u32 %s62, 127
      %s205 = sadd.s32 %s203, %s66
      %s206 = smul.u32 %s205, 128
      %s207 = sshra.s32 %s62, 7
      %s208 = sand.u32 %s62, 127
      %s209 = sadd.s32 %s206, %s208
      %s210 = sld [smem:[#allocation5 + %s209]]
      %s211 = ssub.s32 %s202, %s210
      %s212 = ssub.s32 %s54, %s66
      %s213 = sor.u32 %s211, %s212
      %p214 = scmp.eq.s32.totalorder %s213, 0
      %s216 = sadd.s32 %s215, 1
      %s217 = scalar_select %p214, %s215, %s216
      %p220 = pneg %p214
      %p221 = scmp.eq.s32.totalorder %s47, 3
      %p222 = por %p220, %p221
      %p223 = scmp.ne.s32.totalorder %s215, %s218
      %p224 = scmp.eq.s32.totalorder %s47, 0
      %p225 = por %p223, %p224
      %p226 = scmp.ne.s32.totalorder %s215, %s218
      %p227 = scmp.eq.s32.totalorder %s52, 3
      %p228 = por %p226, %p227
      %p229 = scmp.ne.s32.totalorder %s218, %s219
      %p230 = scmp.eq.s32.totalorder %s52, 0
      %p231 = por %p229, %p230
      %p232 = scmp.ne.s32.totalorder %s218, %s219
      %p233 = scmp.eq.s32.totalorder %s53, 3
      %p234 = por %p232, %p233
      %p236 = scmp.ne.s32.totalorder %s219, %s235
      %p237 = scmp.eq.s32.totalorder %s53, 0
      %p238 = por %p236, %p237
      %s239 = ssub.s32 %s54, %s66
      %p240 = scmp.eq.s32.totalorder %s239, 0
      %s242 = sadd.s32 %s241, 1
      %s243 = scalar_select %p240, %s241, %s242
      %p246 = pneg %p240
      %p247 = scmp.eq.s32.totalorder %s47, 3
      %p248 = por %p246, %p247
      %p249 = scmp.ne.s32.totalorder %s241, %s244
      %p250 = scmp.eq.s32.totalorder %s47, 0
      %p251 = por %p249, %p250
      %p252 = scmp.ne.s32.totalorder %s241, %s244
      %p253 = scmp.eq.s32.totalorder %s52, 3
      %p254 = por %p252, %p253
      %p255 = scmp.ne.s32.totalorder %s244, %s245
      %p256 = scmp.eq.s32.totalorder %s52, 0
      %p257 = por %p255, %p256
      %p258 = scmp.ne.s32.totalorder %s244, %s245
      %p259 = scmp.eq.s32.totalorder %s53, 3
      %p260 = por %p258, %p259
      %p262 = scmp.ne.s32.totalorder %s245, %s261
      %p263 = scmp.eq.s32.totalorder %s53, 0
      %p264 = por %p262, %p263
      %s265 = ssub.s32 %s54, %s66
      %p266 = scmp.eq.s32.totalorder %s265, 0
      %s268 = sadd.s32 %s267, 1
      %s269 = scalar_select %p266, %s267, %s268
      %p272 = pneg %p266
      %p273 = scmp.eq.s32.totalorder %s47, 3
      %p274 = por %p272, %p273
      %p275 = scmp.ne.s32.totalorder %s267, %s270
      %p276 = scmp.eq.s32.totalorder %s47, 0
      %p277 = por %p275, %p276
      %p278 = scmp.ne.s32.totalorder %s267, %s270
      %p279 = scmp.eq.s32.totalorder %s52, 3
      %p280 = por %p278, %p279
      %p281 = scmp.ne.s32.totalorder %s270, %s271
      %p282 = scmp.eq.s32.totalorder %s52, 0
      %p283 = por %p281, %p282
      %p284 = scmp.ne.s32.totalorder %s270, %s271
      %p285 = scmp.eq.s32.totalorder %s53, 3
      %p286 = por %p284, %p285
      %p288 = scmp.ne.s32.totalorder %s271, %s287
      %p289 = scmp.eq.s32.totalorder %s53, 0
      %p290 = por %p288, %p289
      %s291 = ssub.s32 %s54, %s66
      %p292 = scmp.eq.s32.totalorder %s291, 0
      %s294 = sadd.s32 %s293, 1
      %s295 = scalar_select %p292, %s293, %s294
      %p298 = pneg %p292
      %p299 = scmp.eq.s32.totalorder %s47, 3
      %p300 = por %p298, %p299
      %p301 = scmp.ne.s32.totalorder %s293, %s296
      %p302 = scmp.eq.s32.totalorder %s47, 0
      %p303 = por %p301, %p302
      %p304 = scmp.ne.s32.totalorder %s293, %s296
      %p305 = scmp.eq.s32.totalorder %s52, 3
      %p306 = por %p304, %p305
      %p307 = scmp.ne.s32.totalorder %s296, %s297
      %p308 = scmp.eq.s32.totalorder %s52, 0
      %p309 = por %p307, %p308
      %p310 = scmp.ne.s32.totalorder %s296, %s297
      %p311 = scmp.eq.s32.totalorder %s53, 3
      %p312 = por %p310, %p311
      %p314 = scmp.ne.s32.totalorder %s297, %s313
      %p315 = scmp.eq.s32.totalorder %s53, 0
      %p316 = por %p314, %p315
      %s317 = ssub.s32 %s54, %s66
      %p318 = scmp.eq.s32.totalorder %s317, 0
      %s320 = sadd.s32 %s319, 1
      %s321 = scalar_select %p318, %s319, %s320
      %p324 = pneg %p318
      %p325 = scmp.eq.s32.totalorder %s47, 3
      %p326 = por %p324, %p325
      %p327 = scmp.ne.s32.totalorder %s319, %s322
      %p328 = scmp.eq.s32.totalorder %s47, 0
      %p329 = por %p327, %p328
      %p330 = scmp.ne.s32.totalorder %s319, %s322
      %p331 = scmp.eq.s32.totalorder %s52, 3
      %p332 = por %p330, %p331
      %p333 = scmp.ne.s32.totalorder %s322, %s323
      %p334 = scmp.eq.s32.totalorder %s52, 0
      %p335 = por %p333, %p334
      %p336 = scmp.ne.s32.totalorder %s322, %s323
      %p337 = scmp.eq.s32.totalorder %s53, 3
      %p338 = por %p336, %p337
      %p340 = scmp.ne.s32.totalorder %s323, %s339
      %p341 = scmp.eq.s32.totalorder %s53, 0
      %p342 = por %p340, %p341
      %p343 = scmp.le.s32.totalorder 1, %s47
      %p344 = scmp.lt.s32.totalorder %s47, 5
      %p345 = pnand %p343, %p344
      %p346 = pneg %p345
      // Predicated region
      $region9: #{tpu_custom_call.1} parent=5 // pred_check
        _
      $region10: #{tpu_custom_call.1} parent=5 // pred_check_branch
        %348 = sbr.rel (%p345) target = $region12
      $region11: #{tpu_custom_call.1} parent=5 // pred_region
        %s349 = ssub.s32 %s47, 1
      $region12: #{tpu_custom_call.1} parent=5 // pred_fallthru
        _
      %p350 = scmp.lt.s32.totalorder %s47, 4
      // Predicated region
      $region13: #{tpu_custom_call.1} parent=5 // pred_check
        %p351 = pneg %p350
      $region14: #{tpu_custom_call.1} parent=5 // pred_check_branch
        %353 = sbr.rel (%p351) target = $region16
      $region15: #{tpu_custom_call.1} parent=5 // pred_region
        // Predicated region
        $region17: #{tpu_custom_call.1} parent=15 // pred_check
          %p354 = pneg %p95
        $region18: #{tpu_custom_call.1} parent=15 // pred_check_branch
          %356 = sbr.rel (%p354) target = $region20
        $region19: #{tpu_custom_call.1} parent=15 // pred_region
          %s357 = sand.u32 %s85, 1
          %s358 = scalar_lea.sflag [#allocation7], %s357
          %s359 = sand.u32 %s85, 1
          %s360 = smul.addr %s359, 32
          %s361 = scalar_lea.vmem [#allocation6], %s360
          %s362 = sshra.s32 %s55, 7
          %s363 = sand.u32 %s55, 127
          %s364 = sadd.s32 %s362, %s54
          %s365 = smul.u32 %s364, 128
          %s366 = sshra.s32 %s55, 7
          %s367 = sand.u32 %s55, 127
          %s368 = sadd.s32 %s365, %s367
          %s369 = sld [smem:[#allocation5 + %s368]]
          %s370 = smul.u32 4, %s369
          %372 = vsyncadd %s358, 0
          %s373 = smul.addr %s370, 8
          %s374 = scalar_lea.hbm %s2, %s373
          %s376 = sshll.u32 %s374, 4
          %s377 = int_to_ptr.hbm [resolvable:$true] %s376
          %s378 = sshll.u32 %s361, 4
          %s379 = int_to_ptr.vmem [resolvable:$true] %s378
          %381 = dma.hbm_to_vmem [thread:$0]  %s377, 512, %s379, %s358
        $region20: #{tpu_custom_call.1} parent=15 // pred_fallthru
          _
        // Predicated region
        $region21: #{tpu_custom_call.1} parent=15 // pred_check
          %p382 = pneg %p137
        $region22: #{tpu_custom_call.1} parent=15 // pred_check_branch
          %384 = sbr.rel (%p382) target = $region24
        $region23: #{tpu_custom_call.1} parent=15 // pred_region
          %s385 = sand.u32 %s47, 1
          %s386 = scalar_lea.sflag [#allocation10], %s385
          %s387 = sand.u32 %s127, 1
          %s388 = smul.addr %s387, 32
          %s389 = scalar_lea.vmem [#allocation9], %s388
          %s390 = sshra.s32 %s55, 7
          %s391 = sand.u32 %s55, 127
          %s392 = sadd.s32 %s390, %s54
          %s393 = smul.u32 %s392, 128
          %s394 = sshra.s32 %s55, 7
          %s395 = sand.u32 %s55, 127
          %s396 = sadd.s32 %s393, %s395
          %s397 = sld [smem:[#allocation5 + %s396]]
          %s398 = smul.u32 4, %s397
          %400 = vsyncadd %s386, 0
          %s401 = smul.addr %s398, 8
          %s402 = scalar_lea.hbm %s3, %s401
          %s404 = sshll.u32 %s402, 4
          %s405 = int_to_ptr.hbm [resolvable:$true] %s404
          %s406 = sshll.u32 %s389, 4
          %s407 = int_to_ptr.vmem [resolvable:$true] %s406
          %409 = dma.hbm_to_vmem [thread:$0]  %s405, 512, %s407, %s386
        $region24: #{tpu_custom_call.1} parent=15 // pred_fallthru
          _
        // Predicated region
        $region25: #{tpu_custom_call.1} parent=15 // pred_check
          %p410 = pneg %p181
        $region26: #{tpu_custom_call.1} parent=15 // pred_check_branch
          %412 = sbr.rel (%p410) target = $region28
        $region27: #{tpu_custom_call.1} parent=15 // pred_region
          %s413 = sand.u32 %s47, 1
          %s414 = scalar_lea.sflag [#allocation10], %s413
          %s415 = sand.u32 %s171, 1
          %s416 = smul.addr %s415, 1024
          %s417 = scalar_lea.vmem [#allocation11], %s416
          %s418 = sshra.s32 %s55, 7
          %s419 = sand.u32 %s55, 127
          %s420 = sadd.s32 %s418, %s54
          %s421 = smul.u32 %s420, 128
          %s422 = sshra.s32 %s55, 7
          %s423 = sand.u32 %s55, 127
          %s424 = sadd.s32 %s421, %s423
          %s425 = sld [smem:[#allocation5 + %s424]]
          %s426 = smul.u32 64, %s425
          %s427 = smul.u32 4, %s54
          %429 = vsyncadd %s414, 0
          %s430 = smul.addr %s426, 8
          %s431 = sadd.s32 %s427, %s430
          %s432 = smul.addr %s431, 4
          %s433 = scalar_lea.hbm %s4, %s432
          %s434 = sshll.u32 %s433, 4
          %s435 = int_to_ptr.hbm [resolvable:$true] %s434
          %s436 = sshll.u32 %s417, 4
          %s437 = int_to_ptr.vmem [resolvable:$true] %s436
          %442 = dma.hbm_to_vmem [thread:$0]  %s435, 16384, %s437, %s414, 512, 256, 16
        $region28: #{tpu_custom_call.1} parent=15 // pred_fallthru
          _
        // Predicated region
        $region29: #{tpu_custom_call.1} parent=15 // pred_check
          %p443 = pneg %p225
        $region30: #{tpu_custom_call.1} parent=15 // pred_check_branch
          %445 = sbr.rel (%p443) target = $region32
        $region31: #{tpu_custom_call.1} parent=15 // pred_region
          %s446 = sand.u32 %s47, 1
          %s447 = scalar_lea.sflag [#allocation13], %s446
          %s448 = sand.u32 %s215, 1
          %s449 = smul.addr %s448, 1024
          %s450 = scalar_lea.vmem [#allocation12], %s449
          %s451 = sshra.s32 %s55, 7
          %s452 = sand.u32 %s55, 127
          %s453 = sadd.s32 %s451, %s54
          %s454 = smul.u32 %s453, 128
          %s455 = sshra.s32 %s55, 7
          %s456 = sand.u32 %s55, 127
          %s457 = sadd.s32 %s454, %s456
          %s458 = sld [smem:[#allocation5 + %s457]]
          %s459 = smul.u32 64, %s458
          %s460 = smul.u32 4, %s54
          %462 = vsyncadd %s447, 0
          %s463 = smul.addr %s459, 8
          %s464 = sadd.s32 %s460, %s463
          %s465 = smul.addr %s464, 4
          %s466 = scalar_lea.hbm %s5, %s465
          %s467 = sshll.u32 %s466, 4
          %s468 = int_to_ptr.hbm [resolvable:$true] %s467
          %s469 = sshll.u32 %s450, 4
          %s470 = int_to_ptr.vmem [resolvable:$true] %s469
          %475 = dma.hbm_to_vmem [thread:$0]  %s468, 16384, %s470, %s447, 512, 256, 16
        $region32: #{tpu_custom_call.1} parent=15 // pred_fallthru
          _
        // Predicated region
        $region33: #{tpu_custom_call.1} parent=15 // pred_check
          %p476 = pneg %p251
        $region34: #{tpu_custom_call.1} parent=15 // pred_check_branch
          %478 = sbr.rel (%p476) target = $region36
        $region35: #{tpu_custom_call.1} parent=15 // pred_region
          %s479 = sand.u32 %s47, 1
          %s480 = scalar_lea.sflag [#allocation13], %s479
          %s481 = sand.u32 %s241, 1
          %s482 = smul.addr %s481, 32
          %s483 = scalar_lea.vmem [#allocation14], %s482
          %s484 = smul.u32 4, %s54
          %486 = vsyncadd %s480, 0
          %s487 = smul.addr %s484, 8
          %s488 = scalar_lea.hbm %s6, %s487
          %s490 = sshll.u32 %s488, 4
          %s491 = int_to_ptr.hbm [resolvable:$true] %s490
          %s492 = sshll.u32 %s483, 4
          %s493 = int_to_ptr.vmem [resolvable:$true] %s492
          %495 = dma.hbm_to_vmem [thread:$0]  %s491, 512, %s493, %s480
        $region36: #{tpu_custom_call.1} parent=15 // pred_fallthru
          _
        // Predicated region
        $region37: #{tpu_custom_call.1} parent=15 // pred_check
          %p496 = pneg %p277
        $region38: #{tpu_custom_call.1} parent=15 // pred_check_branch
          %498 = sbr.rel (%p496) target = $region40
        $region39: #{tpu_custom_call.1} parent=15 // pred_region
          %s499 = sand.u32 %s267, 1
          %s500 = scalar_lea.sflag [#allocation16], %s499
          %s501 = sand.u32 %s267, 1
          %s502 = smul.addr %s501, 32
          %s503 = scalar_lea.vmem [#allocation15], %s502
          %s504 = smul.u32 4, %s54
          %506 = vsyncadd %s500, 0
          %s507 = smul.addr %s504, 8
          %s508 = scalar_lea.hbm %s7, %s507
          %s510 = sshll.u32 %s508, 4
          %s511 = int_to_ptr.hbm [resolvable:$true] %s510
          %s512 = sshll.u32 %s503, 4
          %s513 = int_to_ptr.vmem [resolvable:$true] %s512
          %515 = dma.hbm_to_vmem [thread:$0]  %s511, 512, %s513, %s500
        $region40: #{tpu_custom_call.1} parent=15 // pred_fallthru
          _
      $region16: #{tpu_custom_call.1} parent=5 // pred_fallthru
        _
      %p516 = scmp.le.s32.totalorder 1, %s47
      %p517 = scmp.lt.s32.totalorder %s47, 5
      %p518 = pnand %p516, %p517
      %p519 = pneg %p518
      // Predicated region
      $region41: #{tpu_custom_call.1} parent=5 // pred_check
        _
      $region42: #{tpu_custom_call.1} parent=5 // pred_check_branch
        %521 = sbr.rel (%p518) target = $region44
      $region43: #{tpu_custom_call.1} parent=5 // pred_region
        %s522 = ssub.s32 %s47, 1
        %s523 = sand.u32 %s88, 1
        %s524 = scalar_lea.sflag [#allocation7], %s523
        %s525 = sand.u32 %s88, 1
        %s526 = smul.addr %s525, 32
        %s527 = scalar_lea.vmem [#allocation6], %s526
        // Predicated region
        $region45: #{tpu_custom_call.1} parent=43 // pred_check
          %p528 = pneg %p101
        $region46: #{tpu_custom_call.1} parent=43 // pred_check_branch
          %530 = sbr.rel (%p528) target = $region48
        $region47: #{tpu_custom_call.1} parent=43 // pred_region
          %532 = dma.done %s524, 512
        $region48: #{tpu_custom_call.1} parent=43 // pred_fallthru
          _
        %s533 = sand.u32 %s52, 1
        %s534 = scalar_lea.sflag [#allocation10], %s533
        %s535 = sand.u32 %s130, 1
        %s536 = smul.addr %s535, 32
        %s537 = scalar_lea.vmem [#allocation9], %s536
        // Predicated region
        $region49: #{tpu_custom_call.1} parent=43 // pred_check
          %p538 = pneg %p143
        $region50: #{tpu_custom_call.1} parent=43 // pred_check_branch
          %540 = sbr.rel (%p538) target = $region52
        $region51: #{tpu_custom_call.1} parent=43 // pred_region
          %542 = dma.done %s534, 512
        $region52: #{tpu_custom_call.1} parent=43 // pred_fallthru
          _
        %s543 = sand.u32 %s52, 1
        %s544 = scalar_lea.sflag [#allocation10], %s543
        %s545 = sand.u32 %s174, 1
        %s546 = smul.addr %s545, 1024
        %s547 = scalar_lea.vmem [#allocation11], %s546
        // Predicated region
        $region53: #{tpu_custom_call.1} parent=43 // pred_check
          %p548 = pneg %p187
        $region54: #{tpu_custom_call.1} parent=43 // pred_check_branch
          %550 = sbr.rel (%p548) target = $region56
        $region55: #{tpu_custom_call.1} parent=43 // pred_region
          %552 = dma.done %s544, 16384
        $region56: #{tpu_custom_call.1} parent=43 // pred_fallthru
          _
        %s553 = sand.u32 %s52, 1
        %s554 = scalar_lea.sflag [#allocation13], %s553
        %s555 = sand.u32 %s218, 1
        %s556 = smul.addr %s555, 1024
        %s557 = scalar_lea.vmem [#allocation12], %s556
        // Predicated region
        $region57: #{tpu_custom_call.1} parent=43 // pred_check
          %p558 = pneg %p231
        $region58: #{tpu_custom_call.1} parent=43 // pred_check_branch
          %560 = sbr.rel (%p558) target = $region60
        $region59: #{tpu_custom_call.1} parent=43 // pred_region
          %562 = dma.done %s554, 16384
        $region60: #{tpu_custom_call.1} parent=43 // pred_fallthru
          _
        %s563 = sand.u32 %s52, 1
        %s564 = scalar_lea.sflag [#allocation13], %s563
        %s565 = sand.u32 %s244, 1
        %s566 = smul.addr %s565, 32
        %s567 = scalar_lea.vmem [#allocation14], %s566
        // Predicated region
        $region61: #{tpu_custom_call.1} parent=43 // pred_check
          %p568 = pneg %p257
        $region62: #{tpu_custom_call.1} parent=43 // pred_check_branch
          %570 = sbr.rel (%p568) target = $region64
        $region63: #{tpu_custom_call.1} parent=43 // pred_region
          %572 = dma.done %s564, 512
        $region64: #{tpu_custom_call.1} parent=43 // pred_fallthru
          _
        %s573 = sand.u32 %s270, 1
        %s574 = scalar_lea.sflag [#allocation16], %s573
        %s575 = sand.u32 %s270, 1
        %s576 = smul.addr %s575, 32
        %s577 = scalar_lea.vmem [#allocation15], %s576
        // Predicated region
        $region65: #{tpu_custom_call.1} parent=43 // pred_check
          %p578 = pneg %p283
        $region66: #{tpu_custom_call.1} parent=43 // pred_check_branch
          %580 = sbr.rel (%p578) target = $region68
        $region67: #{tpu_custom_call.1} parent=43 // pred_region
          %582 = dma.done %s574, 512
        $region68: #{tpu_custom_call.1} parent=43 // pred_fallthru
          _
        %s583 = sand.u32 %s88, 1
        %s584 = scalar_lea.sflag [#allocation7], %s583
        %s585 = sand.u32 %s88, 1
        %s586 = smul.addr %s585, 32
        %s587 = scalar_lea.vmem [#allocation6], %s586
        %p588 = pneg %p101
        %p589 = pneg %p98
        %s590 = sand.u32 %s52, 1
        %s591 = scalar_lea.sflag [#allocation10], %s590
        %s592 = sand.u32 %s130, 1
        %s593 = smul.addr %s592, 32
        %s594 = scalar_lea.vmem [#allocation9], %s593
        %p595 = pneg %p143
        %p596 = pneg %p140
        %s597 = sand.u32 %s52, 1
        %s598 = scalar_lea.sflag [#allocation10], %s597
        %s599 = sand.u32 %s174, 1
        %s600 = smul.addr %s599, 1024
        %s601 = scalar_lea.vmem [#allocation11], %s600
        %p602 = pneg %p187
        %p603 = pneg %p184
        %s604 = sand.u32 %s52, 1
        %s605 = scalar_lea.sflag [#allocation13], %s604
        %s606 = sand.u32 %s218, 1
        %s607 = smul.addr %s606, 1024
        %s608 = scalar_lea.vmem [#allocation12], %s607
        %p609 = pneg %p231
        %p610 = pneg %p228
        %s611 = sand.u32 %s52, 1
        %s612 = scalar_lea.sflag [#allocation13], %s611
        %s613 = sand.u32 %s244, 1
        %s614 = smul.addr %s613, 32
        %s615 = scalar_lea.vmem [#allocation14], %s614
        %p616 = pneg %p257
        %p617 = pneg %p254
        %s618 = sand.u32 %s270, 1
        %s619 = scalar_lea.sflag [#allocation16], %s618
        %s620 = sand.u32 %s270, 1
        %s621 = smul.addr %s620, 32
        %s622 = scalar_lea.vmem [#allocation15], %s621
        %p623 = pneg %p283
        %p624 = pneg %p280
        %p625 = pneg %p309
        %p626 = pneg %p306
        %s627 = sand.u32 %s296, 1
        %s628 = scalar_lea.sflag [#allocation8], %s627
        %s629 = sand.u32 %s296, 1
        %s630 = smul.addr %s629, 32
        %s631 = scalar_lea.vmem [#allocation17], %s630
        %p632 = pneg %p335
        %p633 = pneg %p332
        %s634 = sand.u32 %s322, 1
        %s635 = scalar_lea.sflag [#allocation19], %s634
        %s636 = sand.u32 %s322, 1
        %s637 = smul.addr %s636, 32
        %s638 = scalar_lea.vmem [#allocation18], %s637
        %s639 = sshra.s32 %s57, 7
        %s640 = sand.u32 %s57, 127
        %s641 = sadd.s32 %s639, %s56
        %s642 = smul.u32 %s641, 128
        %s643 = sshra.s32 %s57, 7
        %s644 = sand.u32 %s57, 127
        %s645 = sadd.s32 %s642, %s644
        %s646 = sld [smem:[#allocation5 + %s645]]
        %s647 = smul.u32 4, %s646
        %s648 = sshra.s32 %s57, 7
        %s649 = sand.u32 %s57, 127
        %s650 = sadd.s32 %s648, %s56
        %s651 = smul.u32 %s650, 128
        %s652 = sshra.s32 %s57, 7
        %s653 = sand.u32 %s57, 127
        %s654 = sadd.s32 %s651, %s653
        %s655 = sld [smem:[#allocation5 + %s654]]
        %s656 = smul.u32 4, %s655
        %s657 = sshra.s32 %s57, 7
        %s658 = sand.u32 %s57, 127
        %s659 = sadd.s32 %s657, %s56
        %s660 = smul.u32 %s659, 128
        %s661 = sshra.s32 %s57, 7
        %s662 = sand.u32 %s57, 127
        %s663 = sadd.s32 %s660, %s662
        %s664 = sld [smem:[#allocation5 + %s663]]
        %s665 = smul.u32 64, %s664
        %s666 = smul.u32 4, %s56
        %s667 = sshra.s32 %s57, 7
        %s668 = sand.u32 %s57, 127
        %s669 = sadd.s32 %s667, %s56
        %s670 = smul.u32 %s669, 128
        %s671 = sshra.s32 %s57, 7
        %s672 = sand.u32 %s57, 127
        %s673 = sadd.s32 %s670, %s672
        %s674 = sld [smem:[#allocation5 + %s673]]
        %s675 = smul.u32 64, %s674
        %s676 = smul.u32 4, %s56
        %s677 = smul.u32 4, %s56
        %s678 = smul.u32 4, %s56
        %s679 = smul.u32 4, %s56
        %s680 = smul.u32 4, %s56
        %p681 = scmp.eq.s32.totalorder %s57, 0
        // Predicated region
        $region69: #{tpu_custom_call.1} parent=43 // pred_check
          %p682 = pneg %p681
        $region70: #{tpu_custom_call.1} parent=43 // pred_check_branch
          %684 = sbr.rel (%p682) target = $region72
        $region71: #{tpu_custom_call.1} parent=43 // pred_region
          %v685 = vld [vmem:[%s567] sm:$0xff]
          %v686 = vld [vmem:[%s567 + $0x8] sm:$0xff]
          %v687 = vld [vmem:[%s567 + $0x10] sm:$0xff]
          %v688 = vld [vmem:[%s567 + $0x18] sm:$0xff]
          %689 = vst [vmem:[%s631] sm:$0xff] %v685
          %690 = vst [vmem:[%s631 + $0x8] sm:$0xff] %v686
          %691 = vst [vmem:[%s631 + $0x10] sm:$0xff] %v687
          %692 = vst [vmem:[%s631 + $0x18] sm:$0xff] %v688
          %693 = vst [vmem:[#allocation2] sm:$0xff] 0.0
          %694 = vst [vmem:[#allocation2 + $0x8] sm:$0xff] 0.0
          %695 = vst [vmem:[#allocation2 + $0x10] sm:$0xff] 0.0
          %696 = vst [vmem:[#allocation2 + $0x18] sm:$0xff] 0.0
        $region72: #{tpu_custom_call.1} parent=43 // pred_fallthru
          _
        %s697 = sld [smem:[#allocation4 + %s56]]
        %p698 = scmp.lt.s32.totalorder %s57, %s697
        // Predicated region
        $region73: #{tpu_custom_call.1} parent=43 // pred_check
          %p699 = pneg %p698
        $region74: #{tpu_custom_call.1} parent=43 // pred_check_branch
          %701 = sbr.rel (%p699) target = $region76
        $region75: #{tpu_custom_call.1} parent=43 // pred_region
          %v702 = vld [vmem:[%s527] sm:$0xff]
          %v703 = vld [vmem:[%s527 + $0x8] sm:$0xff]
          %v704 = vld [vmem:[%s527 + $0x10] sm:$0xff]
          %v705 = vld [vmem:[%s527 + $0x18] sm:$0xff]
          %v706 = vpack.c.bf16 %v702, %v702
          %v707 = vpack.c.bf16 %v703, %v703
          %v708 = vpack.c.bf16 %v704, %v704
          %v709 = vpack.c.bf16 %v705, %v705
          %v710 = vld [vmem:[%s537] sm:$0xff]
          %v711 = vld [vmem:[%s537 + $0x8] sm:$0xff]
          %v712 = vld [vmem:[%s537 + $0x10] sm:$0xff]
          %v713 = vld [vmem:[%s537 + $0x18] sm:$0xff]
          %v714 = vpack.c.bf16 %v710, %v710
          %v715 = vpack.c.bf16 %v711, %v711
          %v716 = vpack.c.bf16 %v712, %v712
          %v717 = vpack.c.bf16 %v713, %v713
          %v718 = vld [vmem:[%s631] sm:$0xff]
          %v719 = vld [vmem:[%s631 + $0x8] sm:$0xff]
          %v720 = vld [vmem:[%s631 + $0x10] sm:$0xff]
          %v721 = vld [vmem:[%s631 + $0x18] sm:$0xff]
          %v722 = vld [vmem:[%s547] sm:$0xff]
          %v723 = vld [vmem:[%s547 + $0x8] sm:$0xff]
          %v724 = vld [vmem:[%s547 + $0x10] sm:$0xff]
          %v725 = vld [vmem:[%s547 + $0x18] sm:$0xff]
          %v726 = vld [vmem:[%s547 + $0x20] sm:$0xff]
          %v727 = vld [vmem:[%s547 + $0x28] sm:$0xff]
          %v728 = vld [vmem:[%s547 + $0x30] sm:$0xff]
          %v729 = vld [vmem:[%s547 + $0x38] sm:$0xff]
          %v730 = vld [vmem:[%s547 + $0x40] sm:$0xff]
          %v731 = vld [vmem:[%s547 + $0x48] sm:$0xff]
          %v732 = vld [vmem:[%s547 + $0x50] sm:$0xff]
          %v733 = vld [vmem:[%s547 + $0x58] sm:$0xff]
          %v734 = vld [vmem:[%s547 + $0x60] sm:$0xff]
          %v735 = vld [vmem:[%s547 + $0x68] sm:$0xff]
          %v736 = vld [vmem:[%s547 + $0x70] sm:$0xff]
          %v737 = vld [vmem:[%s547 + $0x78] sm:$0xff]
          %v738 = vld [vmem:[%s547 + $0x80] sm:$0xff]
          %v739 = vld [vmem:[%s547 + $0x88] sm:$0xff]
          %v740 = vld [vmem:[%s547 + $0x90] sm:$0xff]
          %v741 = vld [vmem:[%s547 + $0x98] sm:$0xff]
          %v742 = vld [vmem:[%s547 + $0xa0] sm:$0xff]
          %v743 = vld [vmem:[%s547 + $0xa8] sm:$0xff]
          %v744 = vld [vmem:[%s547 + $0xb0] sm:$0xff]
          %v745 = vld [vmem:[%s547 + $0xb8] sm:$0xff]
          %v746 = vld [vmem:[%s547 + $0xc0] sm:$0xff]
          %v747 = vld [vmem:[%s547 + $0xc8] sm:$0xff]
          %v748 = vld [vmem:[%s547 + $0xd0] sm:$0xff]
          %v749 = vld [vmem:[%s547 + $0xd8] sm:$0xff]
          %v750 = vld [vmem:[%s547 + $0xe0] sm:$0xff]
          %v751 = vld [vmem:[%s547 + $0xe8] sm:$0xff]
          %v752 = vld [vmem:[%s547 + $0xf0] sm:$0xff]
          %v753 = vld [vmem:[%s547 + $0xf8] sm:$0xff]
          %v754 = vld [vmem:[%s547 + $0x100] sm:$0xff]
          %v755 = vld [vmem:[%s547 + $0x108] sm:$0xff]
          %v756 = vld [vmem:[%s547 + $0x110] sm:$0xff]
          %v757 = vld [vmem:[%s547 + $0x118] sm:$0xff]
          %v758 = vld [vmem:[%s547 + $0x120] sm:$0xff]
          %v759 = vld [vmem:[%s547 + $0x128] sm:$0xff]
          %v760 = vld [vmem:[%s547 + $0x130] sm:$0xff]
          %v761 = vld [vmem:[%s547 + $0x138] sm:$0xff]
          %v762 = vld [vmem:[%s547 + $0x140] sm:$0xff]
          %v763 = vld [vmem:[%s547 + $0x148] sm:$0xff]
          %v764 = vld [vmem:[%s547 + $0x150] sm:$0xff]
          %v765 = vld [vmem:[%s547 + $0x158] sm:$0xff]
          %v766 = vld [vmem:[%s547 + $0x160] sm:$0xff]
          %v767 = vld [vmem:[%s547 + $0x168] sm:$0xff]
          %v768 = vld [vmem:[%s547 + $0x170] sm:$0xff]
          %v769 = vld [vmem:[%s547 + $0x178] sm:$0xff]
          %v770 = vld [vmem:[%s547 + $0x180] sm:$0xff]
          %v771 = vld [vmem:[%s547 + $0x188] sm:$0xff]
          %v772 = vld [vmem:[%s547 + $0x190] sm:$0xff]
          %v773 = vld [vmem:[%s547 + $0x198] sm:$0xff]
          %v774 = vld [vmem:[%s547 + $0x1a0] sm:$0xff]
          %v775 = vld [vmem:[%s547 + $0x1a8] sm:$0xff]
          %v776 = vld [vmem:[%s547 + $0x1b0] sm:$0xff]
          %v777 = vld [vmem:[%s547 + $0x1b8] sm:$0xff]
          %v778 = vld [vmem:[%s547 + $0x1c0] sm:$0xff]
          %v779 = vld [vmem:[%s547 + $0x1c8] sm:$0xff]
          %v780 = vld [vmem:[%s547 + $0x1d0] sm:$0xff]
          %v781 = vld [vmem:[%s547 + $0x1d8] sm:$0xff]
          %v782 = vld [vmem:[%s547 + $0x1e0] sm:$0xff]
          %v783 = vld [vmem:[%s547 + $0x1e8] sm:$0xff]
          %v784 = vld [vmem:[%s547 + $0x1f0] sm:$0xff]
          %v785 = vld [vmem:[%s547 + $0x1f8] sm:$0xff]
          %v786 = vld [vmem:[%s547 + $0x200] sm:$0xff]
          %v787 = vld [vmem:[%s547 + $0x208] sm:$0xff]
          %v788 = vld [vmem:[%s547 + $0x210] sm:$0xff]
          %v789 = vld [vmem:[%s547 + $0x218] sm:$0xff]
          %v790 = vld [vmem:[%s547 + $0x220] sm:$0xff]
          %v791 = vld [vmem:[%s547 + $0x228] sm:$0xff]
          %v792 = vld [vmem:[%s547 + $0x230] sm:$0xff]
          %v793 = vld [vmem:[%s547 + $0x238] sm:$0xff]
          %v794 = vld [vmem:[%s547 + $0x240] sm:$0xff]
          %v795 = vld [vmem:[%s547 + $0x248] sm:$0xff]
          %v796 = vld [vmem:[%s547 + $0x250] sm:$0xff]
          %v797 = vld [vmem:[%s547 + $0x258] sm:$0xff]
          %v798 = vld [vmem:[%s547 + $0x260] sm:$0xff]
          %v799 = vld [vmem:[%s547 + $0x268] sm:$0xff]
          %v800 = vld [vmem:[%s547 + $0x270] sm:$0xff]
          %v801 = vld [vmem:[%s547 + $0x278] sm:$0xff]
          %v802 = vld [vmem:[%s547 + $0x280] sm:$0xff]
          %v803 = vld [vmem:[%s547 + $0x288] sm:$0xff]
          %v804 = vld [vmem:[%s547 + $0x290] sm:$0xff]
          %v805 = vld [vmem:[%s547 + $0x298] sm:$0xff]
          %v806 = vld [vmem:[%s547 + $0x2a0] sm:$0xff]
          %v807 = vld [vmem:[%s547 + $0x2a8] sm:$0xff]
          %v808 = vld [vmem:[%s547 + $0x2b0] sm:$0xff]
          %v809 = vld [vmem:[%s547 + $0x2b8] sm:$0xff]
          %v810 = vld [vmem:[%s547 + $0x2c0] sm:$0xff]
          %v811 = vld [vmem:[%s547 + $0x2c8] sm:$0xff]
          %v812 = vld [vmem:[%s547 + $0x2d0] sm:$0xff]
          %v813 = vld [vmem:[%s547 + $0x2d8] sm:$0xff]
          %v814 = vld [vmem:[%s547 + $0x2e0] sm:$0xff]
          %v815 = vld [vmem:[%s547 + $0x2e8] sm:$0xff]
          %v816 = vld [vmem:[%s547 + $0x2f0] sm:$0xff]
          %v817 = vld [vmem:[%s547 + $0x2f8] sm:$0xff]
          %v818 = vld [vmem:[%s547 + $0x300] sm:$0xff]
          %v819 = vld [vmem:[%s547 + $0x308] sm:$0xff]
          %v820 = vld [vmem:[%s547 + $0x310] sm:$0xff]
          %v821 = vld [vmem:[%s547 + $0x318] sm:$0xff]
          %v822 = vld [vmem:[%s547 + $0x320] sm:$0xff]
          %v823 = vld [vmem:[%s547 + $0x328] sm:$0xff]
          %v824 = vld [vmem:[%s547 + $0x330] sm:$0xff]
          %v825 = vld [vmem:[%s547 + $0x338] sm:$0xff]
          %v826 = vld [vmem:[%s547 + $0x340] sm:$0xff]
          %v827 = vld [vmem:[%s547 + $0x348] sm:$0xff]
          %v828 = vld [vmem:[%s547 + $0x350] sm:$0xff]
          %v829 = vld [vmem:[%s547 + $0x358] sm:$0xff]
          %v830 = vld [vmem:[%s547 + $0x360] sm:$0xff]
          %v831 = vld [vmem:[%s547 + $0x368] sm:$0xff]
          %v832 = vld [vmem:[%s547 + $0x370] sm:$0xff]
          %v833 = vld [vmem:[%s547 + $0x378] sm:$0xff]
          %v834 = vld [vmem:[%s547 + $0x380] sm:$0xff]
          %v835 = vld [vmem:[%s547 + $0x388] sm:$0xff]
          %v836 = vld [vmem:[%s547 + $0x390] sm:$0xff]
          %v837 = vld [vmem:[%s547 + $0x398] sm:$0xff]
          %v838 = vld [vmem:[%s547 + $0x3a0] sm:$0xff]
          %v839 = vld [vmem:[%s547 + $0x3a8] sm:$0xff]
          %v840 = vld [vmem:[%s547 + $0x3b0] sm:$0xff]
          %v841 = vld [vmem:[%s547 + $0x3b8] sm:$0xff]
          %v842 = vld [vmem:[%s547 + $0x3c0] sm:$0xff]
          %v843 = vld [vmem:[%s547 + $0x3c8] sm:$0xff]
          %v844 = vld [vmem:[%s547 + $0x3d0] sm:$0xff]
          %v845 = vld [vmem:[%s547 + $0x3d8] sm:$0xff]
          %v846 = vld [vmem:[%s547 + $0x3e0] sm:$0xff]
          %v847 = vld [vmem:[%s547 + $0x3e8] sm:$0xff]
          %v848 = vld [vmem:[%s547 + $0x3f0] sm:$0xff]
          %v849 = vld [vmem:[%s547 + $0x3f8] sm:$0xff]
          %v978 = vunpack.c.l.b16 %v722
          %v979 = vunpack.c.h.b16 %v722
          %v980 = vunpack.c.l.b16 %v723
          %v981 = vunpack.c.h.b16 %v723
          %v982 = vunpack.c.l.b16 %v724
          %v983 = vunpack.c.h.b16 %v724
          %v984 = vunpack.c.l.b16 %v725
          %v985 = vunpack.c.h.b16 %v725
          %v986 = vunpack.c.l.b16 %v726
          %v987 = vunpack.c.h.b16 %v726
          %v988 = vunpack.c.l.b16 %v727
          %v989 = vunpack.c.h.b16 %v727
          %v990 = vunpack.c.l.b16 %v728
          %v991 = vunpack.c.h.b16 %v728
          %v992 = vunpack.c.l.b16 %v729
          %v993 = vunpack.c.h.b16 %v729
          %v994 = vunpack.c.l.b16 %v730
          %v995 = vunpack.c.h.b16 %v730
          %v996 = vunpack.c.l.b16 %v731
          %v997 = vunpack.c.h.b16 %v731
          %v998 = vunpack.c.l.b16 %v732
          %v999 = vunpack.c.h.b16 %v732
          %v1000 = vunpack.c.l.b16 %v733
          %v1001 = vunpack.c.h.b16 %v733
          %v1002 = vunpack.c.l.b16 %v734
          %v1003 = vunpack.c.h.b16 %v734
          %v1004 = vunpack.c.l.b16 %v735
          %v1005 = vunpack.c.h.b16 %v735
          %v1006 = vunpack.c.l.b16 %v736
          %v1007 = vunpack.c.h.b16 %v736
          %v1008 = vunpack.c.l.b16 %v737
          %v1009 = vunpack.c.h.b16 %v737
          %v1010 = vunpack.c.l.b16 %v738
          %v1011 = vunpack.c.h.b16 %v738
          %v1012 = vunpack.c.l.b16 %v739
          %v1013 = vunpack.c.h.b16 %v739
          %v1014 = vunpack.c.l.b16 %v740
          %v1015 = vunpack.c.h.b16 %v740
          %v1016 = vunpack.c.l.b16 %v741
          %v1017 = vunpack.c.h.b16 %v741
          %v1018 = vunpack.c.l.b16 %v742
          %v1019 = vunpack.c.h.b16 %v742
          %v1020 = vunpack.c.l.b16 %v743
          %v1021 = vunpack.c.h.b16 %v743
          %v1022 = vunpack.c.l.b16 %v744
          %v1023 = vunpack.c.h.b16 %v744
          %v1024 = vunpack.c.l.b16 %v745
          %v1025 = vunpack.c.h.b16 %v745
          %v1026 = vunpack.c.l.b16 %v746
          %v1027 = vunpack.c.h.b16 %v746
          %v1028 = vunpack.c.l.b16 %v747
          %v1029 = vunpack.c.h.b16 %v747
          %v1030 = vunpack.c.l.b16 %v748
          %v1031 = vunpack.c.h.b16 %v748
          %v1032 = vunpack.c.l.b16 %v749
          %v1033 = vunpack.c.h.b16 %v749
          %v1034 = vunpack.c.l.b16 %v750
          %v1035 = vunpack.c.h.b16 %v750
          %v1036 = vunpack.c.l.b16 %v751
          %v1037 = vunpack.c.h.b16 %v751
          %v1038 = vunpack.c.l.b16 %v752
          %v1039 = vunpack.c.h.b16 %v752
          %v1040 = vunpack.c.l.b16 %v753
          %v1041 = vunpack.c.h.b16 %v753
          %v1042 = vunpack.c.l.b16 %v754
          %v1043 = vunpack.c.h.b16 %v754
          %v1044 = vunpack.c.l.b16 %v755
          %v1045 = vunpack.c.h.b16 %v755
          %v1046 = vunpack.c.l.b16 %v756
          %v1047 = vunpack.c.h.b16 %v756
          %v1048 = vunpack.c.l.b16 %v757
          %v1049 = vunpack.c.h.b16 %v757
          %v1050 = vunpack.c.l.b16 %v758
          %v1051 = vunpack.c.h.b16 %v758
          %v1052 = vunpack.c.l.b16 %v759
          %v1053 = vunpack.c.h.b16 %v759
          %v1054 = vunpack.c.l.b16 %v760
          %v1055 = vunpack.c.h.b16 %v760
          %v1056 = vunpack.c.l.b16 %v761
          %v1057 = vunpack.c.h.b16 %v761
          %v1058 = vunpack.c.l.b16 %v762
          %v1059 = vunpack.c.h.b16 %v762
          %v1060 = vunpack.c.l.b16 %v763
          %v1061 = vunpack.c.h.b16 %v763
          %v1062 = vunpack.c.l.b16 %v764
          %v1063 = vunpack.c.h.b16 %v764
          %v1064 = vunpack.c.l.b16 %v765
          %v1065 = vunpack.c.h.b16 %v765
          %v1066 = vunpack.c.l.b16 %v766
          %v1067 = vunpack.c.h.b16 %v766
          %v1068 = vunpack.c.l.b16 %v767
          %v1069 = vunpack.c.h.b16 %v767
          %v1070 = vunpack.c.l.b16 %v768
          %v1071 = vunpack.c.h.b16 %v768
          %v1072 = vunpack.c.l.b16 %v769
          %v1073 = vunpack.c.h.b16 %v769
          %v1074 = vunpack.c.l.b16 %v770
          %v1075 = vunpack.c.h.b16 %v770
          %v1076 = vunpack.c.l.b16 %v771
          %v1077 = vunpack.c.h.b16 %v771
          %v1078 = vunpack.c.l.b16 %v772
          %v1079 = vunpack.c.h.b16 %v772
          %v1080 = vunpack.c.l.b16 %v773
          %v1081 = vunpack.c.h.b16 %v773
          %v1082 = vunpack.c.l.b16 %v774
          %v1083 = vunpack.c.h.b16 %v774
          %v1084 = vunpack.c.l.b16 %v775
          %v1085 = vunpack.c.h.b16 %v775
          %v1086 = vunpack.c.l.b16 %v776
          %v1087 = vunpack.c.h.b16 %v776
          %v1088 = vunpack.c.l.b16 %v777
          %v1089 = vunpack.c.h.b16 %v777
          %v1090 = vunpack.c.l.b16 %v778
          %v1091 = vunpack.c.h.b16 %v778
          %v1092 = vunpack.c.l.b16 %v779
          %v1093 = vunpack.c.h.b16 %v779
          %v1094 = vunpack.c.l.b16 %v780
          %v1095 = vunpack.c.h.b16 %v780
          %v1096 = vunpack.c.l.b16 %v781
          %v1097 = vunpack.c.h.b16 %v781
          %v1098 = vunpack.c.l.b16 %v782
          %v1099 = vunpack.c.h.b16 %v782
          %v1100 = vunpack.c.l.b16 %v783
          %v1101 = vunpack.c.h.b16 %v783
          %v1102 = vunpack.c.l.b16 %v784
          %v1103 = vunpack.c.h.b16 %v784
          %v1104 = vunpack.c.l.b16 %v785
          %v1105 = vunpack.c.h.b16 %v785
          %v1106 = vunpack.c.l.b16 %v786
          %v1107 = vunpack.c.h.b16 %v786
          %v1108 = vunpack.c.l.b16 %v787
          %v1109 = vunpack.c.h.b16 %v787
          %v1110 = vunpack.c.l.b16 %v788
          %v1111 = vunpack.c.h.b16 %v788
          %v1112 = vunpack.c.l.b16 %v789
          %v1113 = vunpack.c.h.b16 %v789
          %v1114 = vunpack.c.l.b16 %v790
          %v1115 = vunpack.c.h.b16 %v790
          %v1116 = vunpack.c.l.b16 %v791
          %v1117 = vunpack.c.h.b16 %v791
          %v1118 = vunpack.c.l.b16 %v792
          %v1119 = vunpack.c.h.b16 %v792
          %v1120 = vunpack.c.l.b16 %v793
          %v1121 = vunpack.c.h.b16 %v793
          %v1122 = vunpack.c.l.b16 %v794
          %v1123 = vunpack.c.h.b16 %v794
          %v1124 = vunpack.c.l.b16 %v795
          %v1125 = vunpack.c.h.b16 %v795
          %v1126 = vunpack.c.l.b16 %v796
          %v1127 = vunpack.c.h.b16 %v796
          %v1128 = vunpack.c.l.b16 %v797
          %v1129 = vunpack.c.h.b16 %v797
          %v1130 = vunpack.c.l.b16 %v798
          %v1131 = vunpack.c.h.b16 %v798
          %v1132 = vunpack.c.l.b16 %v799
          %v1133 = vunpack.c.h.b16 %v799
          %v1134 = vunpack.c.l.b16 %v800
          %v1135 = vunpack.c.h.b16 %v800
          %v1136 = vunpack.c.l.b16 %v801
          %v1137 = vunpack.c.h.b16 %v801
          %v1138 = vunpack.c.l.b16 %v802
          %v1139 = vunpack.c.h.b16 %v802
          %v1140 = vunpack.c.l.b16 %v803
          %v1141 = vunpack.c.h.b16 %v803
          %v1142 = vunpack.c.l.b16 %v804
          %v1143 = vunpack.c.h.b16 %v804
          %v1144 = vunpack.c.l.b16 %v805
          %v1145 = vunpack.c.h.b16 %v805
          %v1146 = vunpack.c.l.b16 %v806
          %v1147 = vunpack.c.h.b16 %v806
          %v1148 = vunpack.c.l.b16 %v807
          %v1149 = vunpack.c.h.b16 %v807
          %v1150 = vunpack.c.l.b16 %v808
          %v1151 = vunpack.c.h.b16 %v808
          %v1152 = vunpack.c.l.b16 %v809
          %v1153 = vunpack.c.h.b16 %v809
          %v1154 = vunpack.c.l.b16 %v810
          %v1155 = vunpack.c.h.b16 %v810
          %v1156 = vunpack.c.l.b16 %v811
          %v1157 = vunpack.c.h.b16 %v811
          %v1158 = vunpack.c.l.b16 %v812
          %v1159 = vunpack.c.h.b16 %v812
          %v1160 = vunpack.c.l.b16 %v813
          %v1161 = vunpack.c.h.b16 %v813
          %v1162 = vunpack.c.l.b16 %v814
          %v1163 = vunpack.c.h.b16 %v814
          %v1164 = vunpack.c.l.b16 %v815
          %v1165 = vunpack.c.h.b16 %v815
          %v1166 = vunpack.c.l.b16 %v816
          %v1167 = vunpack.c.h.b16 %v816
          %v1168 = vunpack.c.l.b16 %v817
          %v1169 = vunpack.c.h.b16 %v817
          %v1170 = vunpack.c.l.b16 %v818
          %v1171 = vunpack.c.h.b16 %v818
          %v1172 = vunpack.c.l.b16 %v819
          %v1173 = vunpack.c.h.b16 %v819
          %v1174 = vunpack.c.l.b16 %v820
          %v1175 = vunpack.c.h.b16 %v820
          %v1176 = vunpack.c.l.b16 %v821
          %v1177 = vunpack.c.h.b16 %v821
          %v1178 = vunpack.c.l.b16 %v822
          %v1179 = vunpack.c.h.b16 %v822
          %v1180 = vunpack.c.l.b16 %v823
          %v1181 = vunpack.c.h.b16 %v823
          %v1182 = vunpack.c.l.b16 %v824
          %v1183 = vunpack.c.h.b16 %v824
          %v1184 = vunpack.c.l.b16 %v825
          %v1185 = vunpack.c.h.b16 %v825
          %v1186 = vunpack.c.l.b16 %v826
          %v1187 = vunpack.c.h.b16 %v826
          %v1188 = vunpack.c.l.b16 %v827
          %v1189 = vunpack.c.h.b16 %v827
          %v1190 = vunpack.c.l.b16 %v828
          %v1191 = vunpack.c.h.b16 %v828
          %v1192 = vunpack.c.l.b16 %v829
          %v1193 = vunpack.c.h.b16 %v829
          %v1194 = vunpack.c.l.b16 %v830
          %v1195 = vunpack.c.h.b16 %v830
          %v1196 = vunpack.c.l.b16 %v831
          %v1197 = vunpack.c.h.b16 %v831
          %v1198 = vunpack.c.l.b16 %v832
          %v1199 = vunpack.c.h.b16 %v832
          %v1200 = vunpack.c.l.b16 %v833
          %v1201 = vunpack.c.h.b16 %v833
          %v1202 = vunpack.c.l.b16 %v834
          %v1203 = vunpack.c.h.b16 %v834
          %v1204 = vunpack.c.l.b16 %v835
          %v1205 = vunpack.c.h.b16 %v835
          %v1206 = vunpack.c.l.b16 %v836
          %v1207 = vunpack.c.h.b16 %v836
          %v1208 = vunpack.c.l.b16 %v837
          %v1209 = vunpack.c.h.b16 %v837
          %v1210 = vunpack.c.l.b16 %v838
          %v1211 = vunpack.c.h.b16 %v838
          %v1212 = vunpack.c.l.b16 %v839
          %v1213 = vunpack.c.h.b16 %v839
          %v1214 = vunpack.c.l.b16 %v840
          %v1215 = vunpack.c.h.b16 %v840
          %v1216 = vunpack.c.l.b16 %v841
          %v1217 = vunpack.c.h.b16 %v841
          %v1218 = vunpack.c.l.b16 %v842
          %v1219 = vunpack.c.h.b16 %v842
          %v1220 = vunpack.c.l.b16 %v843
          %v1221 = vunpack.c.h.b16 %v843
          %v1222 = vunpack.c.l.b16 %v844
          %v1223 = vunpack.c.h.b16 %v844
          %v1224 = vunpack.c.l.b16 %v845
          %v1225 = vunpack.c.h.b16 %v845
          %v1226 = vunpack.c.l.b16 %v846
          %v1227 = vunpack.c.h.b16 %v846
          %v1228 = vunpack.c.l.b16 %v847
          %v1229 = vunpack.c.h.b16 %v847
          %v1230 = vunpack.c.l.b16 %v848
          %v1231 = vunpack.c.h.b16 %v848
          %v1232 = vunpack.c.l.b16 %v849
          %v1233 = vunpack.c.h.b16 %v849
          %v1234 = vpack.c.b16 %v982, %v978
          %v1235 = vpack.c.b16 %v983, %v979
          %v1236 = vpack.c.b16 %v984, %v980
          %v1237 = vpack.c.b16 %v985, %v981
          %v1238 = vpack.c.b16 %v990, %v986
          %v1239 = vpack.c.b16 %v991, %v987
          %v1240 = vpack.c.b16 %v992, %v988
          %v1241 = vpack.c.b16 %v993, %v989
          %v1242 = vpack.c.b16 %v998, %v994
          %v1243 = vpack.c.b16 %v999, %v995
          %v1244 = vpack.c.b16 %v1000, %v996
          %v1245 = vpack.c.b16 %v1001, %v997
          %v1246 = vpack.c.b16 %v1006, %v1002
          %v1247 = vpack.c.b16 %v1007, %v1003
          %v1248 = vpack.c.b16 %v1008, %v1004
          %v1249 = vpack.c.b16 %v1009, %v1005
          %v1250 = vpack.c.b16 %v1014, %v1010
          %v1251 = vpack.c.b16 %v1015, %v1011
          %v1252 = vpack.c.b16 %v1016, %v1012
          %v1253 = vpack.c.b16 %v1017, %v1013
          %v1254 = vpack.c.b16 %v1022, %v1018
          %v1255 = vpack.c.b16 %v1023, %v1019
          %v1256 = vpack.c.b16 %v1024, %v1020
          %v1257 = vpack.c.b16 %v1025, %v1021
          %v1258 = vpack.c.b16 %v1030, %v1026
          %v1259 = vpack.c.b16 %v1031, %v1027
          %v1260 = vpack.c.b16 %v1032, %v1028
          %v1261 = vpack.c.b16 %v1033, %v1029
          %v1262 = vpack.c.b16 %v1038, %v1034
          %v1263 = vpack.c.b16 %v1039, %v1035
          %v1264 = vpack.c.b16 %v1040, %v1036
          %v1265 = vpack.c.b16 %v1041, %v1037
          %v1266 = vpack.c.b16 %v1046, %v1042
          %v1267 = vpack.c.b16 %v1047, %v1043
          %v1268 = vpack.c.b16 %v1048, %v1044
          %v1269 = vpack.c.b16 %v1049, %v1045
          %v1270 = vpack.c.b16 %v1054, %v1050
          %v1271 = vpack.c.b16 %v1055, %v1051
          %v1272 = vpack.c.b16 %v1056, %v1052
          %v1273 = vpack.c.b16 %v1057, %v1053
          %v1274 = vpack.c.b16 %v1062, %v1058
          %v1275 = vpack.c.b16 %v1063, %v1059
          %v1276 = vpack.c.b16 %v1064, %v1060
          %v1277 = vpack.c.b16 %v1065, %v1061
          %v1278 = vpack.c.b16 %v1070, %v1066
          %v1279 = vpack.c.b16 %v1071, %v1067
          %v1280 = vpack.c.b16 %v1072, %v1068
          %v1281 = vpack.c.b16 %v1073, %v1069
          %v1282 = vpack.c.b16 %v1078, %v1074
          %v1283 = vpack.c.b16 %v1079, %v1075
          %v1284 = vpack.c.b16 %v1080, %v1076
          %v1285 = vpack.c.b16 %v1081, %v1077
          %v1286 = vpack.c.b16 %v1086, %v1082
          %v1287 = vpack.c.b16 %v1087, %v1083
          %v1288 = vpack.c.b16 %v1088, %v1084
          %v1289 = vpack.c.b16 %v1089, %v1085
          %v1290 = vpack.c.b16 %v1094, %v1090
          %v1291 = vpack.c.b16 %v1095, %v1091
          %v1292 = vpack.c.b16 %v1096, %v1092
          %v1293 = vpack.c.b16 %v1097, %v1093
          %v1294 = vpack.c.b16 %v1102, %v1098
          %v1295 = vpack.c.b16 %v1103, %v1099
          %v1296 = vpack.c.b16 %v1104, %v1100
          %v1297 = vpack.c.b16 %v1105, %v1101
          %v1298 = vpack.c.b16 %v1110, %v1106
          %v1299 = vpack.c.b16 %v1111, %v1107
          %v1300 = vpack.c.b16 %v1112, %v1108
          %v1301 = vpack.c.b16 %v1113, %v1109
          %v1302 = vpack.c.b16 %v1118, %v1114
          %v1303 = vpack.c.b16 %v1119, %v1115
          %v1304 = vpack.c.b16 %v1120, %v1116
          %v1305 = vpack.c.b16 %v1121, %v1117
          %v1306 = vpack.c.b16 %v1126, %v1122
          %v1307 = vpack.c.b16 %v1127, %v1123
          %v1308 = vpack.c.b16 %v1128, %v1124
          %v1309 = vpack.c.b16 %v1129, %v1125
          %v1310 = vpack.c.b16 %v1134, %v1130
          %v1311 = vpack.c.b16 %v1135, %v1131
          %v1312 = vpack.c.b16 %v1136, %v1132
          %v1313 = vpack.c.b16 %v1137, %v1133
          %v1314 = vpack.c.b16 %v1142, %v1138
          %v1315 = vpack.c.b16 %v1143, %v1139
          %v1316 = vpack.c.b16 %v1144, %v1140
          %v1317 = vpack.c.b16 %v1145, %v1141
          %v1318 = vpack.c.b16 %v1150, %v1146
          %v1319 = vpack.c.b16 %v1151, %v1147
          %v1320 = vpack.c.b16 %v1152, %v1148
          %v1321 = vpack.c.b16 %v1153, %v1149
          %v1322 = vpack.c.b16 %v1158, %v1154
          %v1323 = vpack.c.b16 %v1159, %v1155
          %v1324 = vpack.c.b16 %v1160, %v1156
          %v1325 = vpack.c.b16 %v1161, %v1157
          %v1326 = vpack.c.b16 %v1166, %v1162
          %v1327 = vpack.c.b16 %v1167, %v1163
          %v1328 = vpack.c.b16 %v1168, %v1164
          %v1329 = vpack.c.b16 %v1169, %v1165
          %v1330 = vpack.c.b16 %v1174, %v1170
          %v1331 = vpack.c.b16 %v1175, %v1171
          %v1332 = vpack.c.b16 %v1176, %v1172
          %v1333 = vpack.c.b16 %v1177, %v1173
          %v1334 = vpack.c.b16 %v1182, %v1178
          %v1335 = vpack.c.b16 %v1183, %v1179
          %v1336 = vpack.c.b16 %v1184, %v1180
          %v1337 = vpack.c.b16 %v1185, %v1181
          %v1338 = vpack.c.b16 %v1190, %v1186
          %v1339 = vpack.c.b16 %v1191, %v1187
          %v1340 = vpack.c.b16 %v1192, %v1188
          %v1341 = vpack.c.b16 %v1193, %v1189
          %v1342 = vpack.c.b16 %v1198, %v1194
          %v1343 = vpack.c.b16 %v1199, %v1195
          %v1344 = vpack.c.b16 %v1200, %v1196
          %v1345 = vpack.c.b16 %v1201, %v1197
          %v1346 = vpack.c.b16 %v1206, %v1202
          %v1347 = vpack.c.b16 %v1207, %v1203
          %v1348 = vpack.c.b16 %v1208, %v1204
          %v1349 = vpack.c.b16 %v1209, %v1205
          %v1350 = vpack.c.b16 %v1214, %v1210
          %v1351 = vpack.c.b16 %v1215, %v1211
          %v1352 = vpack.c.b16 %v1216, %v1212
          %v1353 = vpack.c.b16 %v1217, %v1213
          %v1354 = vpack.c.b16 %v1222, %v1218
          %v1355 = vpack.c.b16 %v1223, %v1219
          %v1356 = vpack.c.b16 %v1224, %v1220
          %v1357 = vpack.c.b16 %v1225, %v1221
          %v1358 = vpack.c.b16 %v1230, %v1226
          %v1359 = vpack.c.b16 %v1231, %v1227
          %v1360 = vpack.c.b16 %v1232, %v1228
          %v1361 = vpack.c.b16 %v1233, %v1229
          %1490 = vmatpush.bf16.msra.mxu0 %v1262
          %1491 = vmatpush.bf16.msra.mxu0 %v1258
          %1492 = vmatpush.bf16.msra.mxu0 %v1254
          %1493 = vmatpush.bf16.msra.mxu0 %v1250
          %1494 = vmatpush.bf16.msra.mxu0 %v1246
          %1495 = vmatpush.bf16.msra.mxu0 %v1242
          %1496 = vmatpush.bf16.msra.mxu0 %v1238
          %1497 = vmatpush.bf16.msra.mxu0 %v1234
          %1498 = vmatmul.bf16.gmra.mxu0 %v706
          %v1499 = vpop.f32.mrf.mxu0
          %v1500 = vadd.f32 0.0, %v1499
          %v1501 = vpop.f32.mrf.mxu0
          %1502 = vdwg.mxu0
          %1503 = vmatpush.bf16.msra.mxu0 %v1294
          %1504 = vmatpush.bf16.msra.mxu0 %v1290
          %1505 = vmatpush.bf16.msra.mxu0 %v1286
          %1506 = vmatpush.bf16.msra.mxu0 %v1282
          %1507 = vmatpush.bf16.msra.mxu0 %v1278
          %1508 = vmatpush.bf16.msra.mxu0 %v1274
          %1509 = vmatpush.bf16.msra.mxu0 %v1270
          %1510 = vmatpush.bf16.msra.mxu0 %v1266
          %1511 = vmatmul.bf16.gmra.mxu0 %v707
          %v1512 = vpop.f32.mrf.mxu0
          %v1513 = vadd.f32 %v1500, %v1512
          %v1514 = vpop.f32.mrf.mxu0
          %1515 = vdwg.mxu0
          %1516 = vmatpush.bf16.msra.mxu0 %v1326
          %1517 = vmatpush.bf16.msra.mxu0 %v1322
          %1518 = vmatpush.bf16.msra.mxu0 %v1318
          %1519 = vmatpush.bf16.msra.mxu0 %v1314
          %1520 = vmatpush.bf16.msra.mxu0 %v1310
          %1521 = vmatpush.bf16.msra.mxu0 %v1306
          %1522 = vmatpush.bf16.msra.mxu0 %v1302
          %1523 = vmatpush.bf16.msra.mxu0 %v1298
          %1524 = vmatmul.bf16.gmra.mxu0 %v708
          %v1525 = vpop.f32.mrf.mxu0
          %v1526 = vadd.f32 %v1513, %v1525
          %v1527 = vpop.f32.mrf.mxu0
          %1528 = vdwg.mxu0
          %1529 = vmatpush.bf16.msra.mxu0 %v1358
          %1530 = vmatpush.bf16.msra.mxu0 %v1354
          %1531 = vmatpush.bf16.msra.mxu0 %v1350
          %1532 = vmatpush.bf16.msra.mxu0 %v1346
          %1533 = vmatpush.bf16.msra.mxu0 %v1342
          %1534 = vmatpush.bf16.msra.mxu0 %v1338
          %1535 = vmatpush.bf16.msra.mxu0 %v1334
          %1536 = vmatpush.bf16.msra.mxu0 %v1330
          %1537 = vmatmul.bf16.gmra.mxu0 %v709
          %v1538 = vpop.f32.mrf.mxu0
          %v1539 = vadd.f32 %v1526, %v1538
          %v1540 = vpop.f32.mrf.mxu0
          %1541 = vdwg.mxu0
          %1542 = vmatpush.bf16.msra.mxu0 %v1263
          %1543 = vmatpush.bf16.msra.mxu0 %v1259
          %1544 = vmatpush.bf16.msra.mxu0 %v1255
          %1545 = vmatpush.bf16.msra.mxu0 %v1251
          %1546 = vmatpush.bf16.msra.mxu0 %v1247
          %1547 = vmatpush.bf16.msra.mxu0 %v1243
          %1548 = vmatpush.bf16.msra.mxu0 %v1239
          %1549 = vmatpush.bf16.msra.mxu0 %v1235
          %1550 = vmatmul.bf16.gmra.mxu0 %v706
          %v1551 = vpop.f32.mrf.mxu0
          %v1552 = vadd.f32 0.0, %v1551
          %v1553 = vpop.f32.mrf.mxu0
          %1554 = vdwg.mxu0
          %1555 = vmatpush.bf16.msra.mxu0 %v1295
          %1556 = vmatpush.bf16.msra.mxu0 %v1291
          %1557 = vmatpush.bf16.msra.mxu0 %v1287
          %1558 = vmatpush.bf16.msra.mxu0 %v1283
          %1559 = vmatpush.bf16.msra.mxu0 %v1279
          %1560 = vmatpush.bf16.msra.mxu0 %v1275
          %1561 = vmatpush.bf16.msra.mxu0 %v1271
          %1562 = vmatpush.bf16.msra.mxu0 %v1267
          %1563 = vmatmul.bf16.gmra.mxu0 %v707
          %v1564 = vpop.f32.mrf.mxu0
          %v1565 = vadd.f32 %v1552, %v1564
          %v1566 = vpop.f32.mrf.mxu0
          %1567 = vdwg.mxu0
          %1568 = vmatpush.bf16.msra.mxu0 %v1327
          %1569 = vmatpush.bf16.msra.mxu0 %v1323
          %1570 = vmatpush.bf16.msra.mxu0 %v1319
          %1571 = vmatpush.bf16.msra.mxu0 %v1315
          %1572 = vmatpush.bf16.msra.mxu0 %v1311
          %1573 = vmatpush.bf16.msra.mxu0 %v1307
          %1574 = vmatpush.bf16.msra.mxu0 %v1303
          %1575 = vmatpush.bf16.msra.mxu0 %v1299
          %1576 = vmatmul.bf16.gmra.mxu0 %v708
          %v1577 = vpop.f32.mrf.mxu0
          %v1578 = vadd.f32 %v1565, %v1577
          %v1579 = vpop.f32.mrf.mxu0
          %1580 = vdwg.mxu0
          %1581 = vmatpush.bf16.msra.mxu0 %v1359
          %1582 = vmatpush.bf16.msra.mxu0 %v1355
          %1583 = vmatpush.bf16.msra.mxu0 %v1351
          %1584 = vmatpush.bf16.msra.mxu0 %v1347
          %1585 = vmatpush.bf16.msra.mxu0 %v1343
          %1586 = vmatpush.bf16.msra.mxu0 %v1339
          %1587 = vmatpush.bf16.msra.mxu0 %v1335
          %1588 = vmatpush.bf16.msra.mxu0 %v1331
          %1589 = vmatmul.bf16.gmra.mxu0 %v709
          %v1590 = vpop.f32.mrf.mxu0
          %v1591 = vadd.f32 %v1578, %v1590
          %v1592 = vpop.f32.mrf.mxu0
          %1593 = vdwg.mxu0
          %1594 = vmatpush.bf16.msra.mxu0 %v1264
          %1595 = vmatpush.bf16.msra.mxu0 %v1260
          %1596 = vmatpush.bf16.msra.mxu0 %v1256
          %1597 = vmatpush.bf16.msra.mxu0 %v1252
          %1598 = vmatpush.bf16.msra.mxu0 %v1248
          %1599 = vmatpush.bf16.msra.mxu0 %v1244
          %1600 = vmatpush.bf16.msra.mxu0 %v1240
          %1601 = vmatpush.bf16.msra.mxu0 %v1236
          %1602 = vmatmul.bf16.gmra.mxu0 %v706
          %v1603 = vpop.f32.mrf.mxu0
          %v1604 = vadd.f32 0.0, %v1603
          %v1605 = vpop.f32.mrf.mxu0
          %1606 = vdwg.mxu0
          %1607 = vmatpush.bf16.msra.mxu0 %v1296
          %1608 = vmatpush.bf16.msra.mxu0 %v1292
          %1609 = vmatpush.bf16.msra.mxu0 %v1288
          %1610 = vmatpush.bf16.msra.mxu0 %v1284
          %1611 = vmatpush.bf16.msra.mxu0 %v1280
          %1612 = vmatpush.bf16.msra.mxu0 %v1276
          %1613 = vmatpush.bf16.msra.mxu0 %v1272
          %1614 = vmatpush.bf16.msra.mxu0 %v1268
          %1615 = vmatmul.bf16.gmra.mxu0 %v707
          %v1616 = vpop.f32.mrf.mxu0
          %v1617 = vadd.f32 %v1604, %v1616
          %v1618 = vpop.f32.mrf.mxu0
          %1619 = vdwg.mxu0
          %1620 = vmatpush.bf16.msra.mxu0 %v1328
          %1621 = vmatpush.bf16.msra.mxu0 %v1324
          %1622 = vmatpush.bf16.msra.mxu0 %v1320
          %1623 = vmatpush.bf16.msra.mxu0 %v1316
          %1624 = vmatpush.bf16.msra.mxu0 %v1312
          %1625 = vmatpush.bf16.msra.mxu0 %v1308
          %1626 = vmatpush.bf16.msra.mxu0 %v1304
          %1627 = vmatpush.bf16.msra.mxu0 %v1300
          %1628 = vmatmul.bf16.gmra.mxu0 %v708
          %v1629 = vpop.f32.mrf.mxu0
          %v1630 = vadd.f32 %v1617, %v1629
          %v1631 = vpop.f32.mrf.mxu0
          %1632 = vdwg.mxu0
          %1633 = vmatpush.bf16.msra.mxu0 %v1360
          %1634 = vmatpush.bf16.msra.mxu0 %v1356
          %1635 = vmatpush.bf16.msra.mxu0 %v1352
          %1636 = vmatpush.bf16.msra.mxu0 %v1348
          %1637 = vmatpush.bf16.msra.mxu0 %v1344
          %1638 = vmatpush.bf16.msra.mxu0 %v1340
          %1639 = vmatpush.bf16.msra.mxu0 %v1336
          %1640 = vmatpush.bf16.msra.mxu0 %v1332
          %1641 = vmatmul.bf16.gmra.mxu0 %v709
          %v1642 = vpop.f32.mrf.mxu0
          %v1643 = vadd.f32 %v1630, %v1642
          %v1644 = vpop.f32.mrf.mxu0
          %1645 = vdwg.mxu0
          %1646 = vmatpush.bf16.msra.mxu0 %v1265
          %1647 = vmatpush.bf16.msra.mxu0 %v1261
          %1648 = vmatpush.bf16.msra.mxu0 %v1257
          %1649 = vmatpush.bf16.msra.mxu0 %v1253
          %1650 = vmatpush.bf16.msra.mxu0 %v1249
          %1651 = vmatpush.bf16.msra.mxu0 %v1245
          %1652 = vmatpush.bf16.msra.mxu0 %v1241
          %1653 = vmatpush.bf16.msra.mxu0 %v1237
          %1654 = vmatmul.bf16.gmra.mxu0 %v706
          %v1655 = vpop.f32.mrf.mxu0
          %v1656 = vadd.f32 0.0, %v1655
          %v1657 = vpop.f32.mrf.mxu0
          %1658 = vdwg.mxu0
          %1659 = vmatpush.bf16.msra.mxu0 %v1297
          %1660 = vmatpush.bf16.msra.mxu0 %v1293
          %1661 = vmatpush.bf16.msra.mxu0 %v1289
          %1662 = vmatpush.bf16.msra.mxu0 %v1285
          %1663 = vmatpush.bf16.msra.mxu0 %v1281
          %1664 = vmatpush.bf16.msra.mxu0 %v1277
          %1665 = vmatpush.bf16.msra.mxu0 %v1273
          %1666 = vmatpush.bf16.msra.mxu0 %v1269
          %1667 = vmatmul.bf16.gmra.mxu0 %v707
          %v1668 = vpop.f32.mrf.mxu0
          %v1669 = vadd.f32 %v1656, %v1668
          %v1670 = vpop.f32.mrf.mxu0
          %1671 = vdwg.mxu0
          %1672 = vmatpush.bf16.msra.mxu0 %v1329
          %1673 = vmatpush.bf16.msra.mxu0 %v1325
          %1674 = vmatpush.bf16.msra.mxu0 %v1321
          %1675 = vmatpush.bf16.msra.mxu0 %v1317
          %1676 = vmatpush.bf16.msra.mxu0 %v1313
          %1677 = vmatpush.bf16.msra.mxu0 %v1309
          %1678 = vmatpush.bf16.msra.mxu0 %v1305
          %1679 = vmatpush.bf16.msra.mxu0 %v1301
          %1680 = vmatmul.bf16.gmra.mxu0 %v708
          %v1681 = vpop.f32.mrf.mxu0
          %v1682 = vadd.f32 %v1669, %v1681
          %v1683 = vpop.f32.mrf.mxu0
          %1684 = vdwg.mxu0
          %1685 = vmatpush.bf16.msra.mxu0 %v1361
          %1686 = vmatpush.bf16.msra.mxu0 %v1357
          %1687 = vmatpush.bf16.msra.mxu0 %v1353
          %1688 = vmatpush.bf16.msra.mxu0 %v1349
          %1689 = vmatpush.bf16.msra.mxu0 %v1345
          %1690 = vmatpush.bf16.msra.mxu0 %v1341
          %1691 = vmatpush.bf16.msra.mxu0 %v1337
          %1692 = vmatpush.bf16.msra.mxu0 %v1333
          %1693 = vmatmul.bf16.gmra.mxu0 %v709
          %v1694 = vpop.f32.mrf.mxu0
          %v1695 = vadd.f32 %v1682, %v1694
          %v1696 = vpop.f32.mrf.mxu0
          %1697 = vdwg.mxu0
          %v1698 = vadd.f32 %v718, %v1539
          %v1699 = vadd.f32 %v719, %v1591
          %v1700 = vadd.f32 %v720, %v1643
          %v1701 = vadd.f32 %v721, %v1695
          %1702 = vst [vmem:[%s631] sm:$0xff] %v1698
          %1703 = vst [vmem:[%s631 + $0x8] sm:$0xff] %v1699
          %1704 = vst [vmem:[%s631 + $0x10] sm:$0xff] %v1700
          %1705 = vst [vmem:[%s631 + $0x18] sm:$0xff] %v1701
          %v1706 = vld [vmem:[#allocation2] sm:$0xff]
          %v1707 = vld [vmem:[#allocation2 + $0x8] sm:$0xff]
          %v1708 = vld [vmem:[#allocation2 + $0x10] sm:$0xff]
          %v1709 = vld [vmem:[#allocation2 + $0x18] sm:$0xff]
          %v1710 = vld [vmem:[%s557] sm:$0xff]
          %v1711 = vld [vmem:[%s557 + $0x8] sm:$0xff]
          %v1712 = vld [vmem:[%s557 + $0x10] sm:$0xff]
          %v1713 = vld [vmem:[%s557 + $0x18] sm:$0xff]
          %v1714 = vld [vmem:[%s557 + $0x20] sm:$0xff]
          %v1715 = vld [vmem:[%s557 + $0x28] sm:$0xff]
          %v1716 = vld [vmem:[%s557 + $0x30] sm:$0xff]
          %v1717 = vld [vmem:[%s557 + $0x38] sm:$0xff]
          %v1718 = vld [vmem:[%s557 + $0x40] sm:$0xff]
          %v1719 = vld [vmem:[%s557 + $0x48] sm:$0xff]
          %v1720 = vld [vmem:[%s557 + $0x50] sm:$0xff]
          %v1721 = vld [vmem:[%s557 + $0x58] sm:$0xff]
          %v1722 = vld [vmem:[%s557 + $0x60] sm:$0xff]
          %v1723 = vld [vmem:[%s557 + $0x68] sm:$0xff]
          %v1724 = vld [vmem:[%s557 + $0x70] sm:$0xff]
          %v1725 = vld [vmem:[%s557 + $0x78] sm:$0xff]
          %v1726 = vld [vmem:[%s557 + $0x80] sm:$0xff]
          %v1727 = vld [vmem:[%s557 + $0x88] sm:$0xff]
          %v1728 = vld [vmem:[%s557 + $0x90] sm:$0xff]
          %v1729 = vld [vmem:[%s557 + $0x98] sm:$0xff]
          %v1730 = vld [vmem:[%s557 + $0xa0] sm:$0xff]
          %v1731 = vld [vmem:[%s557 + $0xa8] sm:$0xff]
          %v1732 = vld [vmem:[%s557 + $0xb0] sm:$0xff]
          %v1733 = vld [vmem:[%s557 + $0xb8] sm:$0xff]
          %v1734 = vld [vmem:[%s557 + $0xc0] sm:$0xff]
          %v1735 = vld [vmem:[%s557 + $0xc8] sm:$0xff]
          %v1736 = vld [vmem:[%s557 + $0xd0] sm:$0xff]
          %v1737 = vld [vmem:[%s557 + $0xd8] sm:$0xff]
          %v1738 = vld [vmem:[%s557 + $0xe0] sm:$0xff]
          %v1739 = vld [vmem:[%s557 + $0xe8] sm:$0xff]
          %v1740 = vld [vmem:[%s557 + $0xf0] sm:$0xff]
          %v1741 = vld [vmem:[%s557 + $0xf8] sm:$0xff]
          %v1742 = vld [vmem:[%s557 + $0x100] sm:$0xff]
          %v1743 = vld [vmem:[%s557 + $0x108] sm:$0xff]
          %v1744 = vld [vmem:[%s557 + $0x110] sm:$0xff]
          %v1745 = vld [vmem:[%s557 + $0x118] sm:$0xff]
          %v1746 = vld [vmem:[%s557 + $0x120] sm:$0xff]
          %v1747 = vld [vmem:[%s557 + $0x128] sm:$0xff]
          %v1748 = vld [vmem:[%s557 + $0x130] sm:$0xff]
          %v1749 = vld [vmem:[%s557 + $0x138] sm:$0xff]
          %v1750 = vld [vmem:[%s557 + $0x140] sm:$0xff]
          %v1751 = vld [vmem:[%s557 + $0x148] sm:$0xff]
          %v1752 = vld [vmem:[%s557 + $0x150] sm:$0xff]
          %v1753 = vld [vmem:[%s557 + $0x158] sm:$0xff]
          %v1754 = vld [vmem:[%s557 + $0x160] sm:$0xff]
          %v1755 = vld [vmem:[%s557 + $0x168] sm:$0xff]
          %v1756 = vld [vmem:[%s557 + $0x170] sm:$0xff]
          %v1757 = vld [vmem:[%s557 + $0x178] sm:$0xff]
          %v1758 = vld [vmem:[%s557 + $0x180] sm:$0xff]
          %v1759 = vld [vmem:[%s557 + $0x188] sm:$0xff]
          %v1760 = vld [vmem:[%s557 + $0x190] sm:$0xff]
          %v1761 = vld [vmem:[%s557 + $0x198] sm:$0xff]
          %v1762 = vld [vmem:[%s557 + $0x1a0] sm:$0xff]
          %v1763 = vld [vmem:[%s557 + $0x1a8] sm:$0xff]
          %v1764 = vld [vmem:[%s557 + $0x1b0] sm:$0xff]
          %v1765 = vld [vmem:[%s557 + $0x1b8] sm:$0xff]
          %v1766 = vld [vmem:[%s557 + $0x1c0] sm:$0xff]
          %v1767 = vld [vmem:[%s557 + $0x1c8] sm:$0xff]
          %v1768 = vld [vmem:[%s557 + $0x1d0] sm:$0xff]
          %v1769 = vld [vmem:[%s557 + $0x1d8] sm:$0xff]
          %v1770 = vld [vmem:[%s557 + $0x1e0] sm:$0xff]
          %v1771 = vld [vmem:[%s557 + $0x1e8] sm:$0xff]
          %v1772 = vld [vmem:[%s557 + $0x1f0] sm:$0xff]
          %v1773 = vld [vmem:[%s557 + $0x1f8] sm:$0xff]
          %v1774 = vld [vmem:[%s557 + $0x200] sm:$0xff]
          %v1775 = vld [vmem:[%s557 + $0x208] sm:$0xff]
          %v1776 = vld [vmem:[%s557 + $0x210] sm:$0xff]
          %v1777 = vld [vmem:[%s557 + $0x218] sm:$0xff]
          %v1778 = vld [vmem:[%s557 + $0x220] sm:$0xff]
          %v1779 = vld [vmem:[%s557 + $0x228] sm:$0xff]
          %v1780 = vld [vmem:[%s557 + $0x230] sm:$0xff]
          %v1781 = vld [vmem:[%s557 + $0x238] sm:$0xff]
          %v1782 = vld [vmem:[%s557 + $0x240] sm:$0xff]
          %v1783 = vld [vmem:[%s557 + $0x248] sm:$0xff]
          %v1784 = vld [vmem:[%s557 + $0x250] sm:$0xff]
          %v1785 = vld [vmem:[%s557 + $0x258] sm:$0xff]
          %v1786 = vld [vmem:[%s557 + $0x260] sm:$0xff]
          %v1787 = vld [vmem:[%s557 + $0x268] sm:$0xff]
          %v1788 = vld [vmem:[%s557 + $0x270] sm:$0xff]
          %v1789 = vld [vmem:[%s557 + $0x278] sm:$0xff]
          %v1790 = vld [vmem:[%s557 + $0x280] sm:$0xff]
          %v1791 = vld [vmem:[%s557 + $0x288] sm:$0xff]
          %v1792 = vld [vmem:[%s557 + $0x290] sm:$0xff]
          %v1793 = vld [vmem:[%s557 + $0x298] sm:$0xff]
          %v1794 = vld [vmem:[%s557 + $0x2a0] sm:$0xff]
          %v1795 = vld [vmem:[%s557 + $0x2a8] sm:$0xff]
          %v1796 = vld [vmem:[%s557 + $0x2b0] sm:$0xff]
          %v1797 = vld [vmem:[%s557 + $0x2b8] sm:$0xff]
          %v1798 = vld [vmem:[%s557 + $0x2c0] sm:$0xff]
          %v1799 = vld [vmem:[%s557 + $0x2c8] sm:$0xff]
          %v1800 = vld [vmem:[%s557 + $0x2d0] sm:$0xff]
          %v1801 = vld [vmem:[%s557 + $0x2d8] sm:$0xff]
          %v1802 = vld [vmem:[%s557 + $0x2e0] sm:$0xff]
          %v1803 = vld [vmem:[%s557 + $0x2e8] sm:$0xff]
          %v1804 = vld [vmem:[%s557 + $0x2f0] sm:$0xff]
          %v1805 = vld [vmem:[%s557 + $0x2f8] sm:$0xff]
          %v1806 = vld [vmem:[%s557 + $0x300] sm:$0xff]
          %v1807 = vld [vmem:[%s557 + $0x308] sm:$0xff]
          %v1808 = vld [vmem:[%s557 + $0x310] sm:$0xff]
          %v1809 = vld [vmem:[%s557 + $0x318] sm:$0xff]
          %v1810 = vld [vmem:[%s557 + $0x320] sm:$0xff]
          %v1811 = vld [vmem:[%s557 + $0x328] sm:$0xff]
          %v1812 = vld [vmem:[%s557 + $0x330] sm:$0xff]
          %v1813 = vld [vmem:[%s557 + $0x338] sm:$0xff]
          %v1814 = vld [vmem:[%s557 + $0x340] sm:$0xff]
          %v1815 = vld [vmem:[%s557 + $0x348] sm:$0xff]
          %v1816 = vld [vmem:[%s557 + $0x350] sm:$0xff]
          %v1817 = vld [vmem:[%s557 + $0x358] sm:$0xff]
          %v1818 = vld [vmem:[%s557 + $0x360] sm:$0xff]
          %v1819 = vld [vmem:[%s557 + $0x368] sm:$0xff]
          %v1820 = vld [vmem:[%s557 + $0x370] sm:$0xff]
          %v1821 = vld [vmem:[%s557 + $0x378] sm:$0xff]
          %v1822 = vld [vmem:[%s557 + $0x380] sm:$0xff]
          %v1823 = vld [vmem:[%s557 + $0x388] sm:$0xff]
          %v1824 = vld [vmem:[%s557 + $0x390] sm:$0xff]
          %v1825 = vld [vmem:[%s557 + $0x398] sm:$0xff]
          %v1826 = vld [vmem:[%s557 + $0x3a0] sm:$0xff]
          %v1827 = vld [vmem:[%s557 + $0x3a8] sm:$0xff]
          %v1828 = vld [vmem:[%s557 + $0x3b0] sm:$0xff]
          %v1829 = vld [vmem:[%s557 + $0x3b8] sm:$0xff]
          %v1830 = vld [vmem:[%s557 + $0x3c0] sm:$0xff]
          %v1831 = vld [vmem:[%s557 + $0x3c8] sm:$0xff]
          %v1832 = vld [vmem:[%s557 + $0x3d0] sm:$0xff]
          %v1833 = vld [vmem:[%s557 + $0x3d8] sm:$0xff]
          %v1834 = vld [vmem:[%s557 + $0x3e0] sm:$0xff]
          %v1835 = vld [vmem:[%s557 + $0x3e8] sm:$0xff]
          %v1836 = vld [vmem:[%s557 + $0x3f0] sm:$0xff]
          %v1837 = vld [vmem:[%s557 + $0x3f8] sm:$0xff]
          %v1966 = vunpack.c.l.b16 %v1710
          %v1967 = vunpack.c.h.b16 %v1710
          %v1968 = vunpack.c.l.b16 %v1711
          %v1969 = vunpack.c.h.b16 %v1711
          %v1970 = vunpack.c.l.b16 %v1712
          %v1971 = vunpack.c.h.b16 %v1712
          %v1972 = vunpack.c.l.b16 %v1713
          %v1973 = vunpack.c.h.b16 %v1713
          %v1974 = vunpack.c.l.b16 %v1714
          %v1975 = vunpack.c.h.b16 %v1714
          %v1976 = vunpack.c.l.b16 %v1715
          %v1977 = vunpack.c.h.b16 %v1715
          %v1978 = vunpack.c.l.b16 %v1716
          %v1979 = vunpack.c.h.b16 %v1716
          %v1980 = vunpack.c.l.b16 %v1717
          %v1981 = vunpack.c.h.b16 %v1717
          %v1982 = vunpack.c.l.b16 %v1718
          %v1983 = vunpack.c.h.b16 %v1718
          %v1984 = vunpack.c.l.b16 %v1719
          %v1985 = vunpack.c.h.b16 %v1719
          %v1986 = vunpack.c.l.b16 %v1720
          %v1987 = vunpack.c.h.b16 %v1720
          %v1988 = vunpack.c.l.b16 %v1721
          %v1989 = vunpack.c.h.b16 %v1721
          %v1990 = vunpack.c.l.b16 %v1722
          %v1991 = vunpack.c.h.b16 %v1722
          %v1992 = vunpack.c.l.b16 %v1723
          %v1993 = vunpack.c.h.b16 %v1723
          %v1994 = vunpack.c.l.b16 %v1724
          %v1995 = vunpack.c.h.b16 %v1724
          %v1996 = vunpack.c.l.b16 %v1725
          %v1997 = vunpack.c.h.b16 %v1725
          %v1998 = vunpack.c.l.b16 %v1726
          %v1999 = vunpack.c.h.b16 %v1726
          %v2000 = vunpack.c.l.b16 %v1727
          %v2001 = vunpack.c.h.b16 %v1727
          %v2002 = vunpack.c.l.b16 %v1728
          %v2003 = vunpack.c.h.b16 %v1728
          %v2004 = vunpack.c.l.b16 %v1729
          %v2005 = vunpack.c.h.b16 %v1729
          %v2006 = vunpack.c.l.b16 %v1730
          %v2007 = vunpack.c.h.b16 %v1730
          %v2008 = vunpack.c.l.b16 %v1731
          %v2009 = vunpack.c.h.b16 %v1731
          %v2010 = vunpack.c.l.b16 %v1732
          %v2011 = vunpack.c.h.b16 %v1732
          %v2012 = vunpack.c.l.b16 %v1733
          %v2013 = vunpack.c.h.b16 %v1733
          %v2014 = vunpack.c.l.b16 %v1734
          %v2015 = vunpack.c.h.b16 %v1734
          %v2016 = vunpack.c.l.b16 %v1735
          %v2017 = vunpack.c.h.b16 %v1735
          %v2018 = vunpack.c.l.b16 %v1736
          %v2019 = vunpack.c.h.b16 %v1736
          %v2020 = vunpack.c.l.b16 %v1737
          %v2021 = vunpack.c.h.b16 %v1737
          %v2022 = vunpack.c.l.b16 %v1738
          %v2023 = vunpack.c.h.b16 %v1738
          %v2024 = vunpack.c.l.b16 %v1739
          %v2025 = vunpack.c.h.b16 %v1739
          %v2026 = vunpack.c.l.b16 %v1740
          %v2027 = vunpack.c.h.b16 %v1740
          %v2028 = vunpack.c.l.b16 %v1741
          %v2029 = vunpack.c.h.b16 %v1741
          %v2030 = vunpack.c.l.b16 %v1742
          %v2031 = vunpack.c.h.b16 %v1742
          %v2032 = vunpack.c.l.b16 %v1743
          %v2033 = vunpack.c.h.b16 %v1743
          %v2034 = vunpack.c.l.b16 %v1744
          %v2035 = vunpack.c.h.b16 %v1744
          %v2036 = vunpack.c.l.b16 %v1745
          %v2037 = vunpack.c.h.b16 %v1745
          %v2038 = vunpack.c.l.b16 %v1746
          %v2039 = vunpack.c.h.b16 %v1746
          %v2040 = vunpack.c.l.b16 %v1747
          %v2041 = vunpack.c.h.b16 %v1747
          %v2042 = vunpack.c.l.b16 %v1748
          %v2043 = vunpack.c.h.b16 %v1748
          %v2044 = vunpack.c.l.b16 %v1749
          %v2045 = vunpack.c.h.b16 %v1749
          %v2046 = vunpack.c.l.b16 %v1750
          %v2047 = vunpack.c.h.b16 %v1750
          %v2048 = vunpack.c.l.b16 %v1751
          %v2049 = vunpack.c.h.b16 %v1751
          %v2050 = vunpack.c.l.b16 %v1752
          %v2051 = vunpack.c.h.b16 %v1752
          %v2052 = vunpack.c.l.b16 %v1753
          %v2053 = vunpack.c.h.b16 %v1753
          %v2054 = vunpack.c.l.b16 %v1754
          %v2055 = vunpack.c.h.b16 %v1754
          %v2056 = vunpack.c.l.b16 %v1755
          %v2057 = vunpack.c.h.b16 %v1755
          %v2058 = vunpack.c.l.b16 %v1756
          %v2059 = vunpack.c.h.b16 %v1756
          %v2060 = vunpack.c.l.b16 %v1757
          %v2061 = vunpack.c.h.b16 %v1757
          %v2062 = vunpack.c.l.b16 %v1758
          %v2063 = vunpack.c.h.b16 %v1758
          %v2064 = vunpack.c.l.b16 %v1759
          %v2065 = vunpack.c.h.b16 %v1759
          %v2066 = vunpack.c.l.b16 %v1760
          %v2067 = vunpack.c.h.b16 %v1760
          %v2068 = vunpack.c.l.b16 %v1761
          %v2069 = vunpack.c.h.b16 %v1761
          %v2070 = vunpack.c.l.b16 %v1762
          %v2071 = vunpack.c.h.b16 %v1762
          %v2072 = vunpack.c.l.b16 %v1763
          %v2073 = vunpack.c.h.b16 %v1763
          %v2074 = vunpack.c.l.b16 %v1764
          %v2075 = vunpack.c.h.b16 %v1764
          %v2076 = vunpack.c.l.b16 %v1765
          %v2077 = vunpack.c.h.b16 %v1765
          %v2078 = vunpack.c.l.b16 %v1766
          %v2079 = vunpack.c.h.b16 %v1766
          %v2080 = vunpack.c.l.b16 %v1767
          %v2081 = vunpack.c.h.b16 %v1767
          %v2082 = vunpack.c.l.b16 %v1768
          %v2083 = vunpack.c.h.b16 %v1768
          %v2084 = vunpack.c.l.b16 %v1769
          %v2085 = vunpack.c.h.b16 %v1769
          %v2086 = vunpack.c.l.b16 %v1770
          %v2087 = vunpack.c.h.b16 %v1770
          %v2088 = vunpack.c.l.b16 %v1771
          %v2089 = vunpack.c.h.b16 %v1771
          %v2090 = vunpack.c.l.b16 %v1772
          %v2091 = vunpack.c.h.b16 %v1772
          %v2092 = vunpack.c.l.b16 %v1773
          %v2093 = vunpack.c.h.b16 %v1773
          %v2094 = vunpack.c.l.b16 %v1774
          %v2095 = vunpack.c.h.b16 %v1774
          %v2096 = vunpack.c.l.b16 %v1775
          %v2097 = vunpack.c.h.b16 %v1775
          %v2098 = vunpack.c.l.b16 %v1776
          %v2099 = vunpack.c.h.b16 %v1776
          %v2100 = vunpack.c.l.b16 %v1777
          %v2101 = vunpack.c.h.b16 %v1777
          %v2102 = vunpack.c.l.b16 %v1778
          %v2103 = vunpack.c.h.b16 %v1778
          %v2104 = vunpack.c.l.b16 %v1779
          %v2105 = vunpack.c.h.b16 %v1779
          %v2106 = vunpack.c.l.b16 %v1780
          %v2107 = vunpack.c.h.b16 %v1780
          %v2108 = vunpack.c.l.b16 %v1781
          %v2109 = vunpack.c.h.b16 %v1781
          %v2110 = vunpack.c.l.b16 %v1782
          %v2111 = vunpack.c.h.b16 %v1782
          %v2112 = vunpack.c.l.b16 %v1783
          %v2113 = vunpack.c.h.b16 %v1783
          %v2114 = vunpack.c.l.b16 %v1784
          %v2115 = vunpack.c.h.b16 %v1784
          %v2116 = vunpack.c.l.b16 %v1785
          %v2117 = vunpack.c.h.b16 %v1785
          %v2118 = vunpack.c.l.b16 %v1786
          %v2119 = vunpack.c.h.b16 %v1786
          %v2120 = vunpack.c.l.b16 %v1787
          %v2121 = vunpack.c.h.b16 %v1787
          %v2122 = vunpack.c.l.b16 %v1788
          %v2123 = vunpack.c.h.b16 %v1788
          %v2124 = vunpack.c.l.b16 %v1789
          %v2125 = vunpack.c.h.b16 %v1789
          %v2126 = vunpack.c.l.b16 %v1790
          %v2127 = vunpack.c.h.b16 %v1790
          %v2128 = vunpack.c.l.b16 %v1791
          %v2129 = vunpack.c.h.b16 %v1791
          %v2130 = vunpack.c.l.b16 %v1792
          %v2131 = vunpack.c.h.b16 %v1792
          %v2132 = vunpack.c.l.b16 %v1793
          %v2133 = vunpack.c.h.b16 %v1793
          %v2134 = vunpack.c.l.b16 %v1794
          %v2135 = vunpack.c.h.b16 %v1794
          %v2136 = vunpack.c.l.b16 %v1795
          %v2137 = vunpack.c.h.b16 %v1795
          %v2138 = vunpack.c.l.b16 %v1796
          %v2139 = vunpack.c.h.b16 %v1796
          %v2140 = vunpack.c.l.b16 %v1797
          %v2141 = vunpack.c.h.b16 %v1797
          %v2142 = vunpack.c.l.b16 %v1798
          %v2143 = vunpack.c.h.b16 %v1798
          %v2144 = vunpack.c.l.b16 %v1799
          %v2145 = vunpack.c.h.b16 %v1799
          %v2146 = vunpack.c.l.b16 %v1800
          %v2147 = vunpack.c.h.b16 %v1800
          %v2148 = vunpack.c.l.b16 %v1801
          %v2149 = vunpack.c.h.b16 %v1801
          %v2150 = vunpack.c.l.b16 %v1802
          %v2151 = vunpack.c.h.b16 %v1802
          %v2152 = vunpack.c.l.b16 %v1803
          %v2153 = vunpack.c.h.b16 %v1803
          %v2154 = vunpack.c.l.b16 %v1804
          %v2155 = vunpack.c.h.b16 %v1804
          %v2156 = vunpack.c.l.b16 %v1805
          %v2157 = vunpack.c.h.b16 %v1805
          %v2158 = vunpack.c.l.b16 %v1806
          %v2159 = vunpack.c.h.b16 %v1806
          %v2160 = vunpack.c.l.b16 %v1807
          %v2161 = vunpack.c.h.b16 %v1807
          %v2162 = vunpack.c.l.b16 %v1808
          %v2163 = vunpack.c.h.b16 %v1808
          %v2164 = vunpack.c.l.b16 %v1809
          %v2165 = vunpack.c.h.b16 %v1809
          %v2166 = vunpack.c.l.b16 %v1810
          %v2167 = vunpack.c.h.b16 %v1810
          %v2168 = vunpack.c.l.b16 %v1811
          %v2169 = vunpack.c.h.b16 %v1811
          %v2170 = vunpack.c.l.b16 %v1812
          %v2171 = vunpack.c.h.b16 %v1812
          %v2172 = vunpack.c.l.b16 %v1813
          %v2173 = vunpack.c.h.b16 %v1813
          %v2174 = vunpack.c.l.b16 %v1814
          %v2175 = vunpack.c.h.b16 %v1814
          %v2176 = vunpack.c.l.b16 %v1815
          %v2177 = vunpack.c.h.b16 %v1815
          %v2178 = vunpack.c.l.b16 %v1816
          %v2179 = vunpack.c.h.b16 %v1816
          %v2180 = vunpack.c.l.b16 %v1817
          %v2181 = vunpack.c.h.b16 %v1817
          %v2182 = vunpack.c.l.b16 %v1818
          %v2183 = vunpack.c.h.b16 %v1818
          %v2184 = vunpack.c.l.b16 %v1819
          %v2185 = vunpack.c.h.b16 %v1819
          %v2186 = vunpack.c.l.b16 %v1820
          %v2187 = vunpack.c.h.b16 %v1820
          %v2188 = vunpack.c.l.b16 %v1821
          %v2189 = vunpack.c.h.b16 %v1821
          %v2190 = vunpack.c.l.b16 %v1822
          %v2191 = vunpack.c.h.b16 %v1822
          %v2192 = vunpack.c.l.b16 %v1823
          %v2193 = vunpack.c.h.b16 %v1823
          %v2194 = vunpack.c.l.b16 %v1824
          %v2195 = vunpack.c.h.b16 %v1824
          %v2196 = vunpack.c.l.b16 %v1825
          %v2197 = vunpack.c.h.b16 %v1825
          %v2198 = vunpack.c.l.b16 %v1826
          %v2199 = vunpack.c.h.b16 %v1826
          %v2200 = vunpack.c.l.b16 %v1827
          %v2201 = vunpack.c.h.b16 %v1827
          %v2202 = vunpack.c.l.b16 %v1828
          %v2203 = vunpack.c.h.b16 %v1828
          %v2204 = vunpack.c.l.b16 %v1829
          %v2205 = vunpack.c.h.b16 %v1829
          %v2206 = vunpack.c.l.b16 %v1830
          %v2207 = vunpack.c.h.b16 %v1830
          %v2208 = vunpack.c.l.b16 %v1831
          %v2209 = vunpack.c.h.b16 %v1831
          %v2210 = vunpack.c.l.b16 %v1832
          %v2211 = vunpack.c.h.b16 %v1832
          %v2212 = vunpack.c.l.b16 %v1833
          %v2213 = vunpack.c.h.b16 %v1833
          %v2214 = vunpack.c.l.b16 %v1834
          %v2215 = vunpack.c.h.b16 %v1834
          %v2216 = vunpack.c.l.b16 %v1835
          %v2217 = vunpack.c.h.b16 %v1835
          %v2218 = vunpack.c.l.b16 %v1836
          %v2219 = vunpack.c.h.b16 %v1836
          %v2220 = vunpack.c.l.b16 %v1837
          %v2221 = vunpack.c.h.b16 %v1837
          %v2222 = vpack.c.b16 %v1970, %v1966
          %v2223 = vpack.c.b16 %v1971, %v1967
          %v2224 = vpack.c.b16 %v1972, %v1968
          %v2225 = vpack.c.b16 %v1973, %v1969
          %v2226 = vpack.c.b16 %v1978, %v1974
          %v2227 = vpack.c.b16 %v1979, %v1975
          %v2228 = vpack.c.b16 %v1980, %v1976
          %v2229 = vpack.c.b16 %v1981, %v1977
          %v2230 = vpack.c.b16 %v1986, %v1982
          %v2231 = vpack.c.b16 %v1987, %v1983
          %v2232 = vpack.c.b16 %v1988, %v1984
          %v2233 = vpack.c.b16 %v1989, %v1985
          %v2234 = vpack.c.b16 %v1994, %v1990
          %v2235 = vpack.c.b16 %v1995, %v1991
          %v2236 = vpack.c.b16 %v1996, %v1992
          %v2237 = vpack.c.b16 %v1997, %v1993
          %v2238 = vpack.c.b16 %v2002, %v1998
          %v2239 = vpack.c.b16 %v2003, %v1999
          %v2240 = vpack.c.b16 %v2004, %v2000
          %v2241 = vpack.c.b16 %v2005, %v2001
          %v2242 = vpack.c.b16 %v2010, %v2006
          %v2243 = vpack.c.b16 %v2011, %v2007
          %v2244 = vpack.c.b16 %v2012, %v2008
          %v2245 = vpack.c.b16 %v2013, %v2009
          %v2246 = vpack.c.b16 %v2018, %v2014
          %v2247 = vpack.c.b16 %v2019, %v2015
          %v2248 = vpack.c.b16 %v2020, %v2016
          %v2249 = vpack.c.b16 %v2021, %v2017
          %v2250 = vpack.c.b16 %v2026, %v2022
          %v2251 = vpack.c.b16 %v2027, %v2023
          %v2252 = vpack.c.b16 %v2028, %v2024
          %v2253 = vpack.c.b16 %v2029, %v2025
          %v2254 = vpack.c.b16 %v2034, %v2030
          %v2255 = vpack.c.b16 %v2035, %v2031
          %v2256 = vpack.c.b16 %v2036, %v2032
          %v2257 = vpack.c.b16 %v2037, %v2033
          %v2258 = vpack.c.b16 %v2042, %v2038
          %v2259 = vpack.c.b16 %v2043, %v2039
          %v2260 = vpack.c.b16 %v2044, %v2040
          %v2261 = vpack.c.b16 %v2045, %v2041
          %v2262 = vpack.c.b16 %v2050, %v2046
          %v2263 = vpack.c.b16 %v2051, %v2047
          %v2264 = vpack.c.b16 %v2052, %v2048
          %v2265 = vpack.c.b16 %v2053, %v2049
          %v2266 = vpack.c.b16 %v2058, %v2054
          %v2267 = vpack.c.b16 %v2059, %v2055
          %v2268 = vpack.c.b16 %v2060, %v2056
          %v2269 = vpack.c.b16 %v2061, %v2057
          %v2270 = vpack.c.b16 %v2066, %v2062
          %v2271 = vpack.c.b16 %v2067, %v2063
          %v2272 = vpack.c.b16 %v2068, %v2064
          %v2273 = vpack.c.b16 %v2069, %v2065
          %v2274 = vpack.c.b16 %v2074, %v2070
          %v2275 = vpack.c.b16 %v2075, %v2071
          %v2276 = vpack.c.b16 %v2076, %v2072
          %v2277 = vpack.c.b16 %v2077, %v2073
          %v2278 = vpack.c.b16 %v2082, %v2078
          %v2279 = vpack.c.b16 %v2083, %v2079
          %v2280 = vpack.c.b16 %v2084, %v2080
          %v2281 = vpack.c.b16 %v2085, %v2081
          %v2282 = vpack.c.b16 %v2090, %v2086
          %v2283 = vpack.c.b16 %v2091, %v2087
          %v2284 = vpack.c.b16 %v2092, %v2088
          %v2285 = vpack.c.b16 %v2093, %v2089
          %v2286 = vpack.c.b16 %v2098, %v2094
          %v2287 = vpack.c.b16 %v2099, %v2095
          %v2288 = vpack.c.b16 %v2100, %v2096
          %v2289 = vpack.c.b16 %v2101, %v2097
          %v2290 = vpack.c.b16 %v2106, %v2102
          %v2291 = vpack.c.b16 %v2107, %v2103
          %v2292 = vpack.c.b16 %v2108, %v2104
          %v2293 = vpack.c.b16 %v2109, %v2105
          %v2294 = vpack.c.b16 %v2114, %v2110
          %v2295 = vpack.c.b16 %v2115, %v2111
          %v2296 = vpack.c.b16 %v2116, %v2112
          %v2297 = vpack.c.b16 %v2117, %v2113
          %v2298 = vpack.c.b16 %v2122, %v2118
          %v2299 = vpack.c.b16 %v2123, %v2119
          %v2300 = vpack.c.b16 %v2124, %v2120
          %v2301 = vpack.c.b16 %v2125, %v2121
          %v2302 = vpack.c.b16 %v2130, %v2126
          %v2303 = vpack.c.b16 %v2131, %v2127
          %v2304 = vpack.c.b16 %v2132, %v2128
          %v2305 = vpack.c.b16 %v2133, %v2129
          %v2306 = vpack.c.b16 %v2138, %v2134
          %v2307 = vpack.c.b16 %v2139, %v2135
          %v2308 = vpack.c.b16 %v2140, %v2136
          %v2309 = vpack.c.b16 %v2141, %v2137
          %v2310 = vpack.c.b16 %v2146, %v2142
          %v2311 = vpack.c.b16 %v2147, %v2143
          %v2312 = vpack.c.b16 %v2148, %v2144
          %v2313 = vpack.c.b16 %v2149, %v2145
          %v2314 = vpack.c.b16 %v2154, %v2150
          %v2315 = vpack.c.b16 %v2155, %v2151
          %v2316 = vpack.c.b16 %v2156, %v2152
          %v2317 = vpack.c.b16 %v2157, %v2153
          %v2318 = vpack.c.b16 %v2162, %v2158
          %v2319 = vpack.c.b16 %v2163, %v2159
          %v2320 = vpack.c.b16 %v2164, %v2160
          %v2321 = vpack.c.b16 %v2165, %v2161
          %v2322 = vpack.c.b16 %v2170, %v2166
          %v2323 = vpack.c.b16 %v2171, %v2167
          %v2324 = vpack.c.b16 %v2172, %v2168
          %v2325 = vpack.c.b16 %v2173, %v2169
          %v2326 = vpack.c.b16 %v2178, %v2174
          %v2327 = vpack.c.b16 %v2179, %v2175
          %v2328 = vpack.c.b16 %v2180, %v2176
          %v2329 = vpack.c.b16 %v2181, %v2177
          %v2330 = vpack.c.b16 %v2186, %v2182
          %v2331 = vpack.c.b16 %v2187, %v2183
          %v2332 = vpack.c.b16 %v2188, %v2184
          %v2333 = vpack.c.b16 %v2189, %v2185
          %v2334 = vpack.c.b16 %v2194, %v2190
          %v2335 = vpack.c.b16 %v2195, %v2191
          %v2336 = vpack.c.b16 %v2196, %v2192
          %v2337 = vpack.c.b16 %v2197, %v2193
          %v2338 = vpack.c.b16 %v2202, %v2198
          %v2339 = vpack.c.b16 %v2203, %v2199
          %v2340 = vpack.c.b16 %v2204, %v2200
          %v2341 = vpack.c.b16 %v2205, %v2201
          %v2342 = vpack.c.b16 %v2210, %v2206
          %v2343 = vpack.c.b16 %v2211, %v2207
          %v2344 = vpack.c.b16 %v2212, %v2208
          %v2345 = vpack.c.b16 %v2213, %v2209
          %v2346 = vpack.c.b16 %v2218, %v2214
          %v2347 = vpack.c.b16 %v2219, %v2215
          %v2348 = vpack.c.b16 %v2220, %v2216
          %v2349 = vpack.c.b16 %v2221, %v2217
          %2478 = vmatpush.bf16.msra.mxu0 %v2250
          %2479 = vmatpush.bf16.msra.mxu0 %v2246
          %2480 = vmatpush.bf16.msra.mxu0 %v2242
          %2481 = vmatpush.bf16.msra.mxu0 %v2238
          %2482 = vmatpush.bf16.msra.mxu0 %v2234
          %2483 = vmatpush.bf16.msra.mxu0 %v2230
          %2484 = vmatpush.bf16.msra.mxu0 %v2226
          %2485 = vmatpush.bf16.msra.mxu0 %v2222
          %2486 = vmatmul.bf16.gmra.mxu0 %v714
          %v2487 = vpop.f32.mrf.mxu0
          %v2488 = vadd.f32 0.0, %v2487
          %v2489 = vpop.f32.mrf.mxu0
          %2490 = vdwg.mxu0
          %2491 = vmatpush.bf16.msra.mxu0 %v2282
          %2492 = vmatpush.bf16.msra.mxu0 %v2278
          %2493 = vmatpush.bf16.msra.mxu0 %v2274
          %2494 = vmatpush.bf16.msra.mxu0 %v2270
          %2495 = vmatpush.bf16.msra.mxu0 %v2266
          %2496 = vmatpush.bf16.msra.mxu0 %v2262
          %2497 = vmatpush.bf16.msra.mxu0 %v2258
          %2498 = vmatpush.bf16.msra.mxu0 %v2254
          %2499 = vmatmul.bf16.gmra.mxu0 %v715
          %v2500 = vpop.f32.mrf.mxu0
          %v2501 = vadd.f32 %v2488, %v2500
          %v2502 = vpop.f32.mrf.mxu0
          %2503 = vdwg.mxu0
          %2504 = vmatpush.bf16.msra.mxu0 %v2314
          %2505 = vmatpush.bf16.msra.mxu0 %v2310
          %2506 = vmatpush.bf16.msra.mxu0 %v2306
          %2507 = vmatpush.bf16.msra.mxu0 %v2302
          %2508 = vmatpush.bf16.msra.mxu0 %v2298
          %2509 = vmatpush.bf16.msra.mxu0 %v2294
          %2510 = vmatpush.bf16.msra.mxu0 %v2290
          %2511 = vmatpush.bf16.msra.mxu0 %v2286
          %2512 = vmatmul.bf16.gmra.mxu0 %v716
          %v2513 = vpop.f32.mrf.mxu0
          %v2514 = vadd.f32 %v2501, %v2513
          %v2515 = vpop.f32.mrf.mxu0
          %2516 = vdwg.mxu0
          %2517 = vmatpush.bf16.msra.mxu0 %v2346
          %2518 = vmatpush.bf16.msra.mxu0 %v2342
          %2519 = vmatpush.bf16.msra.mxu0 %v2338
          %2520 = vmatpush.bf16.msra.mxu0 %v2334
          %2521 = vmatpush.bf16.msra.mxu0 %v2330
          %2522 = vmatpush.bf16.msra.mxu0 %v2326
          %2523 = vmatpush.bf16.msra.mxu0 %v2322
          %2524 = vmatpush.bf16.msra.mxu0 %v2318
          %2525 = vmatmul.bf16.gmra.mxu0 %v717
          %v2526 = vpop.f32.mrf.mxu0
          %v2527 = vadd.f32 %v2514, %v2526
          %v2528 = vpop.f32.mrf.mxu0
          %2529 = vdwg.mxu0
          %2530 = vmatpush.bf16.msra.mxu0 %v2251
          %2531 = vmatpush.bf16.msra.mxu0 %v2247
          %2532 = vmatpush.bf16.msra.mxu0 %v2243
          %2533 = vmatpush.bf16.msra.mxu0 %v2239
          %2534 = vmatpush.bf16.msra.mxu0 %v2235
          %2535 = vmatpush.bf16.msra.mxu0 %v2231
          %2536 = vmatpush.bf16.msra.mxu0 %v2227
          %2537 = vmatpush.bf16.msra.mxu0 %v2223
          %2538 = vmatmul.bf16.gmra.mxu0 %v714
          %v2539 = vpop.f32.mrf.mxu0
          %v2540 = vadd.f32 0.0, %v2539
          %v2541 = vpop.f32.mrf.mxu0
          %2542 = vdwg.mxu0
          %2543 = vmatpush.bf16.msra.mxu0 %v2283
          %2544 = vmatpush.bf16.msra.mxu0 %v2279
          %2545 = vmatpush.bf16.msra.mxu0 %v2275
          %2546 = vmatpush.bf16.msra.mxu0 %v2271
          %2547 = vmatpush.bf16.msra.mxu0 %v2267
          %2548 = vmatpush.bf16.msra.mxu0 %v2263
          %2549 = vmatpush.bf16.msra.mxu0 %v2259
          %2550 = vmatpush.bf16.msra.mxu0 %v2255
          %2551 = vmatmul.bf16.gmra.mxu0 %v715
          %v2552 = vpop.f32.mrf.mxu0
          %v2553 = vadd.f32 %v2540, %v2552
          %v2554 = vpop.f32.mrf.mxu0
          %2555 = vdwg.mxu0
          %2556 = vmatpush.bf16.msra.mxu0 %v2315
          %2557 = vmatpush.bf16.msra.mxu0 %v2311
          %2558 = vmatpush.bf16.msra.mxu0 %v2307
          %2559 = vmatpush.bf16.msra.mxu0 %v2303
          %2560 = vmatpush.bf16.msra.mxu0 %v2299
          %2561 = vmatpush.bf16.msra.mxu0 %v2295
          %2562 = vmatpush.bf16.msra.mxu0 %v2291
          %2563 = vmatpush.bf16.msra.mxu0 %v2287
          %2564 = vmatmul.bf16.gmra.mxu0 %v716
          %v2565 = vpop.f32.mrf.mxu0
          %v2566 = vadd.f32 %v2553, %v2565
          %v2567 = vpop.f32.mrf.mxu0
          %2568 = vdwg.mxu0
          %2569 = vmatpush.bf16.msra.mxu0 %v2347
          %2570 = vmatpush.bf16.msra.mxu0 %v2343
          %2571 = vmatpush.bf16.msra.mxu0 %v2339
          %2572 = vmatpush.bf16.msra.mxu0 %v2335
          %2573 = vmatpush.bf16.msra.mxu0 %v2331
          %2574 = vmatpush.bf16.msra.mxu0 %v2327
          %2575 = vmatpush.bf16.msra.mxu0 %v2323
          %2576 = vmatpush.bf16.msra.mxu0 %v2319
          %2577 = vmatmul.bf16.gmra.mxu0 %v717
          %v2578 = vpop.f32.mrf.mxu0
          %v2579 = vadd.f32 %v2566, %v2578
          %v2580 = vpop.f32.mrf.mxu0
          %2581 = vdwg.mxu0
          %2582 = vmatpush.bf16.msra.mxu0 %v2252
          %2583 = vmatpush.bf16.msra.mxu0 %v2248
          %2584 = vmatpush.bf16.msra.mxu0 %v2244
          %2585 = vmatpush.bf16.msra.mxu0 %v2240
          %2586 = vmatpush.bf16.msra.mxu0 %v2236
          %2587 = vmatpush.bf16.msra.mxu0 %v2232
          %2588 = vmatpush.bf16.msra.mxu0 %v2228
          %2589 = vmatpush.bf16.msra.mxu0 %v2224
          %2590 = vmatmul.bf16.gmra.mxu0 %v714
          %v2591 = vpop.f32.mrf.mxu0
          %v2592 = vadd.f32 0.0, %v2591
          %v2593 = vpop.f32.mrf.mxu0
          %2594 = vdwg.mxu0
          %2595 = vmatpush.bf16.msra.mxu0 %v2284
          %2596 = vmatpush.bf16.msra.mxu0 %v2280
          %2597 = vmatpush.bf16.msra.mxu0 %v2276
          %2598 = vmatpush.bf16.msra.mxu0 %v2272
          %2599 = vmatpush.bf16.msra.mxu0 %v2268
          %2600 = vmatpush.bf16.msra.mxu0 %v2264
          %2601 = vmatpush.bf16.msra.mxu0 %v2260
          %2602 = vmatpush.bf16.msra.mxu0 %v2256
          %2603 = vmatmul.bf16.gmra.mxu0 %v715
          %v2604 = vpop.f32.mrf.mxu0
          %v2605 = vadd.f32 %v2592, %v2604
          %v2606 = vpop.f32.mrf.mxu0
          %2607 = vdwg.mxu0
          %2608 = vmatpush.bf16.msra.mxu0 %v2316
          %2609 = vmatpush.bf16.msra.mxu0 %v2312
          %2610 = vmatpush.bf16.msra.mxu0 %v2308
          %2611 = vmatpush.bf16.msra.mxu0 %v2304
          %2612 = vmatpush.bf16.msra.mxu0 %v2300
          %2613 = vmatpush.bf16.msra.mxu0 %v2296
          %2614 = vmatpush.bf16.msra.mxu0 %v2292
          %2615 = vmatpush.bf16.msra.mxu0 %v2288
          %2616 = vmatmul.bf16.gmra.mxu0 %v716
          %v2617 = vpop.f32.mrf.mxu0
          %v2618 = vadd.f32 %v2605, %v2617
          %v2619 = vpop.f32.mrf.mxu0
          %2620 = vdwg.mxu0
          %2621 = vmatpush.bf16.msra.mxu0 %v2348
          %2622 = vmatpush.bf16.msra.mxu0 %v2344
          %2623 = vmatpush.bf16.msra.mxu0 %v2340
          %2624 = vmatpush.bf16.msra.mxu0 %v2336
          %2625 = vmatpush.bf16.msra.mxu0 %v2332
          %2626 = vmatpush.bf16.msra.mxu0 %v2328
          %2627 = vmatpush.bf16.msra.mxu0 %v2324
          %2628 = vmatpush.bf16.msra.mxu0 %v2320
          %2629 = vmatmul.bf16.gmra.mxu0 %v717
          %v2630 = vpop.f32.mrf.mxu0
          %v2631 = vadd.f32 %v2618, %v2630
          %v2632 = vpop.f32.mrf.mxu0
          %2633 = vdwg.mxu0
          %2634 = vmatpush.bf16.msra.mxu0 %v2253
          %2635 = vmatpush.bf16.msra.mxu0 %v2249
          %2636 = vmatpush.bf16.msra.mxu0 %v2245
          %2637 = vmatpush.bf16.msra.mxu0 %v2241
          %2638 = vmatpush.bf16.msra.mxu0 %v2237
          %2639 = vmatpush.bf16.msra.mxu0 %v2233
          %2640 = vmatpush.bf16.msra.mxu0 %v2229
          %2641 = vmatpush.bf16.msra.mxu0 %v2225
          %2642 = vmatmul.bf16.gmra.mxu0 %v714
          %v2643 = vpop.f32.mrf.mxu0
          %v2644 = vadd.f32 0.0, %v2643
          %v2645 = vpop.f32.mrf.mxu0
          %2646 = vdwg.mxu0
          %2647 = vmatpush.bf16.msra.mxu0 %v2285
          %2648 = vmatpush.bf16.msra.mxu0 %v2281
          %2649 = vmatpush.bf16.msra.mxu0 %v2277
          %2650 = vmatpush.bf16.msra.mxu0 %v2273
          %2651 = vmatpush.bf16.msra.mxu0 %v2269
          %2652 = vmatpush.bf16.msra.mxu0 %v2265
          %2653 = vmatpush.bf16.msra.mxu0 %v2261
          %2654 = vmatpush.bf16.msra.mxu0 %v2257
          %2655 = vmatmul.bf16.gmra.mxu0 %v715
          %v2656 = vpop.f32.mrf.mxu0
          %v2657 = vadd.f32 %v2644, %v2656
          %v2658 = vpop.f32.mrf.mxu0
          %2659 = vdwg.mxu0
          %2660 = vmatpush.bf16.msra.mxu0 %v2317
          %2661 = vmatpush.bf16.msra.mxu0 %v2313
          %2662 = vmatpush.bf16.msra.mxu0 %v2309
          %2663 = vmatpush.bf16.msra.mxu0 %v2305
          %2664 = vmatpush.bf16.msra.mxu0 %v2301
          %2665 = vmatpush.bf16.msra.mxu0 %v2297
          %2666 = vmatpush.bf16.msra.mxu0 %v2293
          %2667 = vmatpush.bf16.msra.mxu0 %v2289
          %2668 = vmatmul.bf16.gmra.mxu0 %v716
          %v2669 = vpop.f32.mrf.mxu0
          %v2670 = vadd.f32 %v2657, %v2669
          %v2671 = vpop.f32.mrf.mxu0
          %2672 = vdwg.mxu0
          %2673 = vmatpush.bf16.msra.mxu0 %v2349
          %2674 = vmatpush.bf16.msra.mxu0 %v2345
          %2675 = vmatpush.bf16.msra.mxu0 %v2341
          %2676 = vmatpush.bf16.msra.mxu0 %v2337
          %2677 = vmatpush.bf16.msra.mxu0 %v2333
          %2678 = vmatpush.bf16.msra.mxu0 %v2329
          %2679 = vmatpush.bf16.msra.mxu0 %v2325
          %2680 = vmatpush.bf16.msra.mxu0 %v2321
          %2681 = vmatmul.bf16.gmra.mxu0 %v717
          %v2682 = vpop.f32.mrf.mxu0
          %v2683 = vadd.f32 %v2670, %v2682
          %v2684 = vpop.f32.mrf.mxu0
          %2685 = vdwg.mxu0
          %v2686 = vadd.f32 %v1706, %v2527
          %v2687 = vadd.f32 %v1707, %v2579
          %v2688 = vadd.f32 %v1708, %v2631
          %v2689 = vadd.f32 %v1709, %v2683
          %2690 = vst [vmem:[#allocation2] sm:$0xff] %v2686
          %2691 = vst [vmem:[#allocation2 + $0x8] sm:$0xff] %v2687
          %2692 = vst [vmem:[#allocation2 + $0x10] sm:$0xff] %v2688
          %2693 = vst [vmem:[#allocation2 + $0x18] sm:$0xff] %v2689
        $region76: #{tpu_custom_call.1} parent=43 // pred_fallthru
          _
        %p2694 = scmp.eq.s32.totalorder %s57, 1
        // Predicated region
        $region77: #{tpu_custom_call.1} parent=43 // pred_check
          %p2695 = pneg %p2694
        $region78: #{tpu_custom_call.1} parent=43 // pred_check_branch
          %2697 = sbr.rel (%p2695) target = $region80
        $region79: #{tpu_custom_call.1} parent=43 // pred_region
          %v2698 = vld [vmem:[#allocation2] sm:$0xff]
          %v2699 = vld [vmem:[#allocation2 + $0x8] sm:$0xff]
          %v2700 = vld [vmem:[#allocation2 + $0x10] sm:$0xff]
          %v2701 = vld [vmem:[#allocation2 + $0x18] sm:$0xff]
          %v2702 = vld [vmem:[%s631] sm:$0xff]
          %v2703 = vld [vmem:[%s631 + $0x8] sm:$0xff]
          %v2704 = vld [vmem:[%s631 + $0x10] sm:$0xff]
          %v2705 = vld [vmem:[%s631 + $0x18] sm:$0xff]
          %v2706 = vmul.f32 %v2698, 0.9
          %v2707 = vmul.f32 %v2699, 0.9
          %v2708 = vmul.f32 %v2700, 0.9
          %v2709 = vmul.f32 %v2701, 0.9
          %v2710 = vadd.f32 %v2702, %v2706
          %v2711 = vadd.f32 %v2703, %v2707
          %v2712 = vadd.f32 %v2704, %v2708
          %v2713 = vadd.f32 %v2705, %v2709
          %2714 = vst [vmem:[%s631] sm:$0xff] %v2710
          %2715 = vst [vmem:[%s631 + $0x8] sm:$0xff] %v2711
          %2716 = vst [vmem:[%s631 + $0x10] sm:$0xff] %v2712
          %2717 = vst [vmem:[%s631 + $0x18] sm:$0xff] %v2713
          %v2718 = vld [vmem:[%s577] sm:$0xff]
          %v2719 = vld [vmem:[%s577 + $0x8] sm:$0xff]
          %v2720 = vld [vmem:[%s577 + $0x10] sm:$0xff]
          %v2721 = vld [vmem:[%s577 + $0x18] sm:$0xff]
          %v2722 = vmul.f32 %v2698, 0.1
          %v2723 = vmul.f32 %v2699, 0.1
          %v2724 = vmul.f32 %v2700, 0.1
          %v2725 = vmul.f32 %v2701, 0.1
          %v2726 = vadd.f32 %v2718, %v2722
          %v2727 = vadd.f32 %v2719, %v2723
          %v2728 = vadd.f32 %v2720, %v2724
          %v2729 = vadd.f32 %v2721, %v2725
          %2730 = vst [vmem:[%s638] sm:$0xff] %v2726
          %2731 = vst [vmem:[%s638 + $0x8] sm:$0xff] %v2727
          %2732 = vst [vmem:[%s638 + $0x10] sm:$0xff] %v2728
          %2733 = vst [vmem:[%s638 + $0x18] sm:$0xff] %v2729
        $region80: #{tpu_custom_call.1} parent=43 // pred_fallthru
          _
        %s2734 = sand.u32 %s296, 1
        %s2735 = scalar_lea.sflag [#allocation8], %s2734
        %s2736 = sand.u32 %s296, 1
        %s2737 = smul.addr %s2736, 32
        %s2738 = scalar_lea.vmem [#allocation17], %s2737
        %s2739 = sand.u32 %s322, 1
        %s2740 = scalar_lea.sflag [#allocation19], %s2739
        %s2741 = sand.u32 %s322, 1
        %s2742 = smul.addr %s2741, 32
        %s2743 = scalar_lea.vmem [#allocation18], %s2742
        // Predicated region
        $region81: #{tpu_custom_call.1} parent=43 // pred_check
          %p2744 = pneg %p306
        $region82: #{tpu_custom_call.1} parent=43 // pred_check_branch
          %2746 = sbr.rel (%p2744) target = $region84
        $region83: #{tpu_custom_call.1} parent=43 // pred_region
          %s2747 = smul.u32 4, %s56
          %2749 = vsyncadd %s2735, 0
          %s2750 = smul.addr %s2747, 8
          %s2751 = scalar_lea.hbm %s8, %s2750
          %s2753 = sshll.u32 %s2738, 4
          %s2754 = int_to_ptr.vmem [resolvable:$true] %s2753
          %s2755 = sshll.u32 %s2751, 4
          %s2756 = int_to_ptr.hbm [resolvable:$true] %s2755
          %2758 = dma.vmem_to_hbm [thread:$0]  %s2754, 512, %s2756, %s2735
        $region84: #{tpu_custom_call.1} parent=43 // pred_fallthru
          _
        // Predicated region
        $region85: #{tpu_custom_call.1} parent=43 // pred_check
          %p2759 = pneg %p332
        $region86: #{tpu_custom_call.1} parent=43 // pred_check_branch
          %2761 = sbr.rel (%p2759) target = $region88
        $region87: #{tpu_custom_call.1} parent=43 // pred_region
          %s2762 = smul.u32 4, %s56
          %2764 = vsyncadd %s2740, 0
          %s2765 = smul.addr %s2762, 8
          %s2766 = scalar_lea.hbm %s9, %s2765
          %s2768 = sshll.u32 %s2743, 4
          %s2769 = int_to_ptr.vmem [resolvable:$true] %s2768
          %s2770 = sshll.u32 %s2766, 4
          %s2771 = int_to_ptr.hbm [resolvable:$true] %s2770
          %2773 = dma.vmem_to_hbm [thread:$0]  %s2769, 512, %s2771, %s2740
        $region88: #{tpu_custom_call.1} parent=43 // pred_fallthru
          _
      $region44: #{tpu_custom_call.1} parent=5 // pred_fallthru
        _
      %p2774 = scmp.le.s32.totalorder 2, %s47
      // Predicated region
      $region89: #{tpu_custom_call.1} parent=5 // pred_check
        %p2775 = pneg %p2774
      $region90: #{tpu_custom_call.1} parent=5 // pred_check_branch
        %2777 = sbr.rel (%p2775) target = $region92
      $region91: #{tpu_custom_call.1} parent=5 // pred_region
        %s2778 = ssub.s32 %s47, 2
        // Predicated region
        $region93: #{tpu_custom_call.1} parent=91 // pred_check
          %p2779 = pneg %p312
        $region94: #{tpu_custom_call.1} parent=91 // pred_check_branch
          %2781 = sbr.rel (%p2779) target = $region96
        $region95: #{tpu_custom_call.1} parent=91 // pred_region
          %s2782 = sand.u32 %s297, 1
          %s2783 = scalar_lea.sflag [#allocation8], %s2782
          %s2784 = sand.u32 %s297, 1
          %s2785 = smul.addr %s2784, 32
          %s2786 = scalar_lea.vmem [#allocation17], %s2785
          %2788 = dma.done %s2783, 512
        $region96: #{tpu_custom_call.1} parent=91 // pred_fallthru
          _
        // Predicated region
        $region97: #{tpu_custom_call.1} parent=91 // pred_check
          %p2789 = pneg %p338
        $region98: #{tpu_custom_call.1} parent=91 // pred_check_branch
          %2791 = sbr.rel (%p2789) target = $region100
        $region99: #{tpu_custom_call.1} parent=91 // pred_region
          %s2792 = sand.u32 %s323, 1
          %s2793 = scalar_lea.sflag [#allocation19], %s2792
          %s2794 = sand.u32 %s323, 1
          %s2795 = smul.addr %s2794, 32
          %s2796 = scalar_lea.vmem [#allocation18], %s2795
          %2798 = dma.done %s2793, 512
        $region100: #{tpu_custom_call.1} parent=91 // pred_fallthru
          _
      $region92: #{tpu_custom_call.1} parent=5 // pred_fallthru
        _
    $region6: #{tpu_custom_call.1} parent=1 // loop_footer
      %s51 = sadd.s32 1, %s47
    $region7: #{tpu_custom_call.1} parent=1 // loop_footer_branch
      %46 = sbr.rel target = $region3
    $region8: #{tpu_custom_call.1} parent=1 // loop_exit
      _
    %2799 = vsyncpa [#allocation7], 1
    %s2800 = scalar_lea.sflag [#allocation7], 1
    %2801 = vsyncpa %s2800, 1
    %2802 = vsyncpa [#allocation10], 1
    %s2803 = scalar_lea.sflag [#allocation10], 1
    %2804 = vsyncpa %s2803, 1
    %2805 = vsyncpa [#allocation13], 1
    %s2806 = scalar_lea.sflag [#allocation13], 1
    %2807 = vsyncpa %s2806, 1
    %2808 = vsyncpa [#allocation16], 1
    %s2809 = scalar_lea.sflag [#allocation16], 1
    %2810 = vsyncpa %s2809, 1
    %2811 = vsyncpa [#allocation8], 1
    %s2812 = scalar_lea.sflag [#allocation8], 1
    %2813 = vsyncpa %s2812, 1
    %2814 = vsyncpa [#allocation19], 1
    %s2815 = scalar_lea.sflag [#allocation19], 1
    %2816 = vsyncpa %s2815, 1

</llo_original>
